<compile_context>
chip_gen: v7x
topology: tpu7x:2x2x1
jax: 0.10.0
libtpu: 0.0.40
codegen_flags: <defaults>
</compile_context>

<pallas_src>
import jax
import jax.numpy as jnp
from jax.experimental import pallas as pl
from jax.experimental.pallas import tpu as pltpu

NEG_INF = jnp.float32(-1e30)


def bidaf_attention_kernel(c_ref, q_ref, cmask_ref, qmask_ref,
                           cw_ref, qw_ref, cqw_ref, out_ref):
    f32 = jnp.float32
    c_bf = c_ref[...]                 # (BB, c_len, H) bf16
    q_bf = q_ref[...]                 # (BB, q_len, H) bf16
    cmask_add = cmask_ref[...]        # (BB, 1, c_len) f32 additive mask (0 / -1e30)
    qmask_add = qmask_ref[...]        # (BB, 1, q_len) f32 additive mask
    cw = cw_ref[...]                  # (1, 1, H) f32
    qw = qw_ref[...]                  # (1, 1, H) f32
    cqw = cqw_ref[...]                # (1, 1, H) f32

    H = c_bf.shape[-1]
    cf = c_bf.astype(f32)             # reused for bias fold, s0 and c*a / c*b

    # Single similarity matmul.  Fold cq_weight and q_weight into the c operand:
    #   cb @ q^T = (c*cqw) @ q^T + qw.q^T = s2 + s1
    # s0 and the scalar bias are constant along q, so they cancel out of the
    # q-axis softmax; s1 is constant along c, so it cancels out of the c-axis
    # softmax after the transpose below.  Exactly equivalent to the reference.
    cb = (cf * cqw + qw).astype(jnp.bfloat16)
    l1_raw = jnp.einsum('bch,bqh->bcq', cb, q_bf,
                        preferred_element_type=f32)            # (BB, c_len, q_len)

    # ---- context -> query attention: softmax over q_len (lane axis) ----
    l1 = l1_raw + qmask_add
    e1 = jnp.exp(l1 - jnp.max(l1, axis=-1, keepdims=True))
    sm1 = e1 * pl.reciprocal(jnp.sum(e1, axis=-1, keepdims=True), approx=True)
    sm1_bf = sm1.astype(jnp.bfloat16)

    # ---- query -> context attention in (q_len, c_len) layout: XLU transpose of
    # the existing logits (no second similarity matmul) + the s0 row term.
    s0_row = jnp.sum(cf * cw, axis=-1)[:, None, :]             # (BB, 1, c_len)
    l2 = jnp.swapaxes(l1_raw, -1, -2) + s0_row + cmask_add     # (BB, q_len, c_len)
    e2 = jnp.exp(l2 - jnp.max(l2, axis=-1, keepdims=True))
    inv_l2 = pl.reciprocal(jnp.sum(e2, axis=-1, keepdims=True), approx=True)

    # Deferred normalization: scale the (q_len, H) result, not the (q_len, c_len)
    # attention matrix.  qc == sm2^T @ c  (reassociation of b = sm1 @ sm2^T @ c).
    qc = jnp.einsum('bqc,bch->bqh', e2.astype(jnp.bfloat16), c_bf,
                    preferred_element_type=f32) * inv_l2       # (BB, q_len, H)

    # Fused a / b matmul: one (c_len, q_len) x (q_len, 2H) MXU pass.
    qcat = jnp.concatenate([q_bf, qc.astype(jnp.bfloat16)], axis=-1)   # (BB, q_len, 2H)
    ab = jnp.einsum('bcq,bqh->bch', sm1_bf, qcat,
                    preferred_element_type=f32)                # (BB, c_len, 2H)
    a = ab[:, :, :H]
    b = ab[:, :, H:]

    # Store the four output segments directly (no in-kernel concatenate).
    out_ref[:, :, 0:H] = c_bf.astype(out_ref.dtype)
    out_ref[:, :, H:2 * H] = a.astype(out_ref.dtype)
    out_ref[:, :, 2 * H:3 * H] = (cf * a).astype(out_ref.dtype)
    out_ref[:, :, 3 * H:4 * H] = (cf * b).astype(out_ref.dtype)


def _vmem_limit_bytes():
    """~half of physical VMEM: 64 MiB on v5e/v6e (128 MiB), 32 MiB on v7x (64 MiB)."""
    cap = 128 * 1024 * 1024
    try:
        cap = int(getattr(pltpu.get_tpu_info(), "vmem_capacity_bytes", cap))
    except Exception:
        pass
    return max(16 * 1024 * 1024, min(64 * 1024 * 1024, cap // 2))


def _pick_block_b(B, c_len, q_len, H, budget_bytes):
    """Largest batch block that divides B and fits the VMEM budget, preferring an
    even (>= 2) grid extent so both TensorCores stay busy on v7x."""
    def footprint(bb):
        # Double-buffered I/O blocks: bf16 c, q, out; f32 masks.
        io = bb * (2 * c_len * H + 2 * q_len * H + 4 * c_len + 4 * q_len
                   + 2 * c_len * 4 * H)
        # Generous estimate of live in-kernel intermediates (f32 logits/exp/softmax
        # copies, bf16 operand copies, a/b/c*a/c*b, qc and friends).
        scratch = bb * 4 * (6 * c_len * q_len + 8 * c_len * H + 4 * q_len * H)
        return 2 * io + scratch

    cands = [bb for bb in range(1, B + 1)
             if B % bb == 0 and footprint(bb) <= budget_bytes]
    if not cands:
        return 1
    even = [bb for bb in cands if (B // bb) % 2 == 0]
    if even:
        return max(even)
    multi = [bb for bb in cands if (B // bb) >= 2]
    return max(multi) if multi else max(cands)


def bidaf_attention(c, q, c_mask, q_mask, c_weight, q_weight, cq_weight, bias,
                    block_b=None, out_dtype=jnp.bfloat16):
    """BiDAF attention forward (eval mode).

    `bias` is accepted for API parity with the PyTorch module but is constant
    along both softmax axes, so it cancels exactly out of both masked softmaxes
    (softmax shift invariance) and therefore out of the output.
    Output dtype defaults to bfloat16 (halves HBM writeback); pass
    out_dtype=jnp.float32 for a full-precision output.
    """
    B, c_len, H = c.shape
    q_len = q.shape[1]
    del bias  # cancels exactly; see docstring.

    f32 = jnp.float32
    # bf16 operands for the big DMAs / MXU; masks stay f32 (additive form, laid
    # out so both softmaxes reduce over the lane axis).
    c_bf = c.astype(jnp.bfloat16)
    q_bf = q.astype(jnp.bfloat16)
    c_mask_add = ((1.0 - c_mask.astype(f32)) * NEG_INF).reshape(B, 1, c_len)
    q_mask_add = ((1.0 - q_mask.astype(f32)) * NEG_INF).reshape(B, 1, q_len)

    cw = c_weight.astype(f32).reshape(1, 1, H)     # (H, 1)   -> (1, 1, H)
    qw = q_weight.astype(f32).reshape(1, 1, H)     # (H, 1)   -> (1, 1, H)
    cqw = cq_weight.astype(f32).reshape(1, 1, H)   # (1, 1, H)

    vmem_limit = _vmem_limit_bytes()
    bb = block_b if block_b is not None else _pick_block_b(
        B, c_len, q_len, H, budget_bytes=vmem_limit // 2)
    assert B % bb == 0, "block_b must divide the batch size"
    grid = (B // bb,)

    grid_spec = pltpu.PrefetchScalarGridSpec(
        num_scalar_prefetch=0,
        grid=grid,
        in_specs=[
            pl.BlockSpec((bb, c_len, H), lambda i: (i, 0, 0)),     # c (bf16)
            pl.BlockSpec((bb, q_len, H), lambda i: (i, 0, 0)),     # q (bf16)
            pl.BlockSpec((bb, 1, c_len), lambda i: (i, 0, 0)),     # additive c mask
            pl.BlockSpec((bb, 1, q_len), lambda i: (i, 0, 0)),     # additive q mask
            pl.BlockSpec((1, 1, H), lambda i: (0, 0, 0)),          # c_weight
            pl.BlockSpec((1, 1, H), lambda i: (0, 0, 0)),          # q_weight
            pl.BlockSpec((1, 1, H), lambda i: (0, 0, 0)),          # cq_weight
        ],
        out_specs=pl.BlockSpec((bb, c_len, 4 * H), lambda i: (i, 0, 0)),
    )

    return pl.pallas_call(
        bidaf_attention_kernel,
        out_shape=jax.ShapeDtypeStruct((B, c_len, 4 * H), out_dtype),
        grid_spec=grid_spec,
        compiler_params=pltpu.CompilerParams(
            dimension_semantics=("parallel",),
            vmem_limit_bytes=vmem_limit),
    )(c_bf, q_bf, c_mask_add, q_mask_add, cw, qw, cqw)


def bidaf_attention_ref(c, q, c_mask, q_mask, c_weight, q_weight, cq_weight, bias):
    """Pure-JAX reference matching the PyTorch forward (eval mode)."""
    B, c_len, H = c.shape
    q_len = q.shape[1]
    s0 = jnp.matmul(c, c_weight)                                  # (B, c_len, 1)
    s1 = jnp.swapaxes(jnp.matmul(q, q_weight), 1, 2)              # (B, 1, q_len)
    s2 = jnp.matmul(c * cq_weight, jnp.swapaxes(q, 1, 2))         # (B, c_len, q_len)
    s = s0 + s1 + s2 + bias

    cm = c_mask.astype(jnp.float32).reshape(B, c_len, 1)
    qm = q_mask.astype(jnp.float32).reshape(B, 1, q_len)

    ml1 = qm * s + (1.0 - qm) * (-1e30)
    sm1 = jax.nn.softmax(ml1, axis=2)
    ml2 = cm * s + (1.0 - cm) * (-1e30)
    sm2 = jax.nn.softmax(ml2, axis=1)

    a = jnp.matmul(sm1, q)
    b = jnp.matmul(jnp.matmul(sm1, jnp.swapaxes(sm2, 1, 2)), c)
    return jnp.concatenate([c, a, c * a, c * b], axis=2)


def xavier_uniform(key, shape, fan_in, fan_out):
    bound = (6.0 / (fan_in + fan_out)) ** 0.5
    return jax.random.uniform(key, shape, jnp.float32, -bound, bound)


if __name__ == "__main__":
    # H plays the role of the (2*hidden_size)-wide BiLSTM output in BiDAF.
    B, c_len, q_len, H = 2, 128, 128, 32

    key = jax.random.PRNGKey(0)
    k_c, k_q, k_cw, k_qw, k_cqw = jax.random.split(key, 5)

    c = jax.random.normal(k_c, (B, c_len, H), jnp.float32)
    q = jax.random.normal(k_q, (B, q_len, H), jnp.float32)

    # valid-length masks (1 = keep, 0 = pad)
    c_lens = jnp.array([c_len, 90])
    q_lens = jnp.array([q_len, 37])
    c_mask = (jnp.arange(c_len)[None, :] < c_lens[:, None]).astype(jnp.float32)
    q_mask = (jnp.arange(q_len)[None, :] < q_lens[:, None]).astype(jnp.float32)

    # deterministic parameter init (xavier_uniform-style, like the module)
    c_weight = xavier_uniform(k_cw, (H, 1), fan_in=1, fan_out=H)
    q_weight = xavier_uniform(k_qw, (H, 1), fan_in=1, fan_out=H)
    cq_weight = xavier_uniform(k_cqw, (1, 1, H), fan_in=H, fan_out=H)
    # non-zero bias to exercise the (exact) shift-invariance argument
    bias = jnp.array([0.37], jnp.float32)

    out = bidaf_attention(c, q, c_mask, q_mask, c_weight, q_weight, cq_weight, bias)
    out = jax.block_until_ready(out)

    ref = bidaf_attention_ref(c, q, c_mask, q_mask, c_weight, q_weight, cq_weight, bias)
    assert out.shape == (B, c_len, 4 * H)

    # bf16 inputs/output + bf16 MXU operands + approx reciprocal => compare at a
    # bf16-level tolerance, normalized by the output scale.
    max_err = float(jnp.max(jnp.abs(out.astype(jnp.float32) - ref)))
    scale = float(jnp.max(jnp.abs(ref)))
    assert max_err <= 2e-2 * scale + 1e-3, \
        f"mismatch vs reference: max_err={max_err} scale={scale}"

    print("KERNEL_OK")
</pallas_src>

<mosaic_0001>
module attributes {stable_mosaic.version = 11 : i64} {
  func.func @bidaf_attention_kernel(%arg0: i32, %arg1: memref<1x128x32xbf16, #tpu.memory_space<vmem>>, %arg2: memref<1x128x32xbf16, #tpu.memory_space<vmem>>, %arg3: memref<1x1x128xf32, #tpu.memory_space<vmem>>, %arg4: memref<1x1x128xf32, #tpu.memory_space<vmem>>, %arg5: memref<1x1x32xf32, #tpu.memory_space<vmem>>, %arg6: memref<1x1x32xf32, #tpu.memory_space<vmem>>, %arg7: memref<1x1x32xf32, #tpu.memory_space<vmem>>, %arg8: memref<1x128x128xbf16, #tpu.memory_space<vmem>>) attributes {dimension_semantics = [#tpu.dimension_semantics<parallel>], iteration_bounds = array<i64: 2>, scalar_prefetch = 0 : i64, scratch_operands = 0 : i64, tpu.core_type = #tpu.core_type<tc>, window_params = [{transform_indices = @transform_0, window_bounds = array<i64: 1, 128, 32>}, {transform_indices = @transform_1, window_bounds = array<i64: 1, 128, 32>}, {transform_indices = @transform_2, window_bounds = array<i64: 1, 1, 128>}, {transform_indices = @transform_3, window_bounds = array<i64: 1, 1, 128>}, {pipeline_mode = #tpu.pipeline_mode<synchronous>, transform_indices = @transform_4, window_bounds = array<i64: 1, 1, 32>}, {pipeline_mode = #tpu.pipeline_mode<synchronous>, transform_indices = @transform_5, window_bounds = array<i64: 1, 1, 32>}, {pipeline_mode = #tpu.pipeline_mode<synchronous>, transform_indices = @transform_6, window_bounds = array<i64: 1, 1, 32>}, {transform_indices = @transform_7, window_bounds = array<i64: 1, 128, 128>}]} {
    %c0 = arith.constant 0 : index
    %c0_0 = arith.constant 0 : index
    %c0_1 = arith.constant 0 : index
    %0 = vector.load %arg1[%c0, %c0_0, %c0_1] : memref<1x128x32xbf16, #tpu.memory_space<vmem>>, vector<1x128x32xbf16>
    %c0_2 = arith.constant 0 : index
    %c0_3 = arith.constant 0 : index
    %c0_4 = arith.constant 0 : index
    %1 = vector.load %arg2[%c0_2, %c0_3, %c0_4] : memref<1x128x32xbf16, #tpu.memory_space<vmem>>, vector<1x128x32xbf16>
    %c0_5 = arith.constant 0 : index
    %c0_6 = arith.constant 0 : index
    %c0_7 = arith.constant 0 : index
    %2 = vector.load %arg3[%c0_5, %c0_6, %c0_7] : memref<1x1x128xf32, #tpu.memory_space<vmem>>, vector<1x1x128xf32>
    %c0_8 = arith.constant 0 : index
    %c0_9 = arith.constant 0 : index
    %c0_10 = arith.constant 0 : index
    %3 = vector.load %arg4[%c0_8, %c0_9, %c0_10] : memref<1x1x128xf32, #tpu.memory_space<vmem>>, vector<1x1x128xf32>
    %c0_11 = arith.constant 0 : index
    %c0_12 = arith.constant 0 : index
    %c0_13 = arith.constant 0 : index
    %4 = vector.load %arg5[%c0_11, %c0_12, %c0_13] : memref<1x1x32xf32, #tpu.memory_space<vmem>>, vector<1x1x32xf32>
    %c0_14 = arith.constant 0 : index
    %c0_15 = arith.constant 0 : index
    %c0_16 = arith.constant 0 : index
    %5 = vector.load %arg6[%c0_14, %c0_15, %c0_16] : memref<1x1x32xf32, #tpu.memory_space<vmem>>, vector<1x1x32xf32>
    %c0_17 = arith.constant 0 : index
    %c0_18 = arith.constant 0 : index
    %c0_19 = arith.constant 0 : index
    %6 = vector.load %arg7[%c0_17, %c0_18, %c0_19] : memref<1x1x32xf32, #tpu.memory_space<vmem>>, vector<1x1x32xf32>
    %7 = arith.extf %0 : vector<1x128x32xbf16> to vector<1x128x32xf32>
    %8 = vector.broadcast %6 : vector<1x1x32xf32> to vector<1x128x32xf32>
    %9 = arith.mulf %7, %8 : vector<1x128x32xf32>
    %10 = vector.broadcast %5 : vector<1x1x32xf32> to vector<1x128x32xf32>
    %11 = arith.addf %9, %10 : vector<1x128x32xf32>
    %12 = arith.truncf %11 : vector<1x128x32xf32> to vector<1x128x32xbf16>
    "tpu.trace_start"() <{level = 10 : i32, message = "bch,bqh->bcq"}> : () -> ()
    %cst = arith.constant dense<0.000000e+00> : vector<1x128x128xf32>
    %13 = tpu.matmul %12, %1, %cst {dimension_numbers = #tpu.dot_dimension_numbers<[2], [2], [1], [1], [0, 0, 0, 1, 1, 1], [0], [0]>} : vector<1x128x32xbf16>, vector<1x128x32xbf16>, vector<1x128x128xf32> -> vector<1x128x128xf32>
    "tpu.trace_stop"() : () -> ()
    %14 = vector.broadcast %3 : vector<1x1x128xf32> to vector<1x128x128xf32>
    %15 = arith.addf %13, %14 : vector<1x128x128xf32>
    %cst_20 = arith.constant dense<0xFF800000> : vector<1x128xf32>
    %16 = vector.multi_reduction <maximumf>, %15, %cst_20 [2] : vector<1x128x128xf32> to vector<1x128xf32>
    %17 = vector.shape_cast %16 : vector<1x128xf32> to vector<1x128x1xf32>
    %18 = vector.broadcast %17 : vector<1x128x1xf32> to vector<1x128x128xf32>
    %19 = arith.subf %15, %18 : vector<1x128x128xf32>
    %20 = math.exp %19 : vector<1x128x128xf32>
    %cst_21 = arith.constant dense<0.000000e+00> : vector<1x128xf32>
    %21 = vector.multi_reduction <add>, %20, %cst_21 [2] : vector<1x128x128xf32> to vector<1x128xf32>
    %22 = vector.shape_cast %21 : vector<1x128xf32> to vector<1x128x1xf32>
    %23 = tpu.reciprocal %22 {approx = true} : vector<1x128x1xf32> -> vector<1x128x1xf32>
    %24 = vector.broadcast %23 : vector<1x128x1xf32> to vector<1x128x128xf32>
    %25 = arith.mulf %20, %24 : vector<1x128x128xf32>
    %26 = arith.truncf %25 : vector<1x128x128xf32> to vector<1x128x128xbf16>
    %27 = vector.broadcast %4 : vector<1x1x32xf32> to vector<1x128x32xf32>
    %28 = arith.mulf %7, %27 : vector<1x128x32xf32>
    %cst_22 = arith.constant dense<0.000000e+00> : vector<1x128xf32>
    %29 = vector.multi_reduction <add>, %28, %cst_22 [2] : vector<1x128x32xf32> to vector<1x128xf32>
    %30 = vector.shape_cast %29 : vector<1x128xf32> to vector<1x1x128xf32>
    %31 = tpu.transpose %13, [0, 2, 1] : vector<1x128x128xf32> -> vector<1x128x128xf32>
    %32 = vector.broadcast %30 : vector<1x1x128xf32> to vector<1x128x128xf32>
    %33 = arith.addf %31, %32 : vector<1x128x128xf32>
    %34 = vector.broadcast %2 : vector<1x1x128xf32> to vector<1x128x128xf32>
    %35 = arith.addf %33, %34 : vector<1x128x128xf32>
    %cst_23 = arith.constant dense<0xFF800000> : vector<1x128xf32>
    %36 = vector.multi_reduction <maximumf>, %35, %cst_23 [2] : vector<1x128x128xf32> to vector<1x128xf32>
    %37 = vector.shape_cast %36 : vector<1x128xf32> to vector<1x128x1xf32>
    %38 = vector.broadcast %37 : vector<1x128x1xf32> to vector<1x128x128xf32>
    %39 = arith.subf %35, %38 : vector<1x128x128xf32>
    %40 = math.exp %39 : vector<1x128x128xf32>
    %cst_24 = arith.constant dense<0.000000e+00> : vector<1x128xf32>
    %41 = vector.multi_reduction <add>, %40, %cst_24 [2] : vector<1x128x128xf32> to vector<1x128xf32>
    %42 = vector.shape_cast %41 : vector<1x128xf32> to vector<1x128x1xf32>
    %43 = tpu.reciprocal %42 {approx = true} : vector<1x128x1xf32> -> vector<1x128x1xf32>
    %44 = arith.truncf %40 : vector<1x128x128xf32> to vector<1x128x128xbf16>
    "tpu.trace_start"() <{level = 10 : i32, message = "bqc,bch->bqh"}> : () -> ()
    %cst_25 = arith.constant dense<0.000000e+00> : vector<1x128x32xf32>
    %45 = tpu.matmul %44, %0, %cst_25 {dimension_numbers = #tpu.dot_dimension_numbers<[2], [1], [1], [2], [0, 0, 0, 1, 1, 2], [0], [0]>} : vector<1x128x128xbf16>, vector<1x128x32xbf16>, vector<1x128x32xf32> -> vector<1x128x32xf32>
    "tpu.trace_stop"() : () -> ()
    %46 = vector.broadcast %43 : vector<1x128x1xf32> to vector<1x128x32xf32>
    %47 = arith.mulf %45, %46 : vector<1x128x32xf32>
    %48 = arith.truncf %47 : vector<1x128x32xf32> to vector<1x128x32xbf16>
    %49 = tpu.concatenate %1, %48 in 2 : vector<1x128x32xbf16>, vector<1x128x32xbf16> -> vector<1x128x64xbf16>
    "tpu.trace_start"() <{level = 10 : i32, message = "bcq,bqh->bch"}> : () -> ()
    %cst_26 = arith.constant dense<0.000000e+00> : vector<1x128x64xf32>
    %50 = tpu.matmul %26, %49, %cst_26 {dimension_numbers = #tpu.dot_dimension_numbers<[2], [1], [1], [2], [0, 0, 0, 1, 1, 2], [0], [0]>} : vector<1x128x128xbf16>, vector<1x128x64xbf16>, vector<1x128x64xf32> -> vector<1x128x64xf32>
    "tpu.trace_stop"() : () -> ()
    %51 = vector.extract_strided_slice %50 {offsets = [0, 0, 0], sizes = [1, 128, 32], strides = [1, 1, 1]} : vector<1x128x64xf32> to vector<1x128x32xf32>
    %52 = vector.extract_strided_slice %50 {offsets = [0, 0, 32], sizes = [1, 128, 32], strides = [1, 1, 1]} : vector<1x128x64xf32> to vector<1x128x32xf32>
    %c0_27 = arith.constant 0 : index
    %c0_28 = arith.constant 0 : index
    %c0_29 = arith.constant 0 : index
    %53 = vector.load %arg8[%c0_27, %c0_28, %c0_29] : memref<1x128x128xbf16, #tpu.memory_space<vmem>>, vector<1x128x32xbf16>
    tpu.vector_store %arg8[%c0_27, %c0_28, %c0_29], %0 {strides = array<i32>} : memref<1x128x128xbf16, #tpu.memory_space<vmem>>, vector<1x128x32xbf16>,
    %54 = arith.truncf %51 : vector<1x128x32xf32> to vector<1x128x32xbf16>
    %c0_30 = arith.constant 0 : index
    %c0_31 = arith.constant 0 : index
    %c32 = arith.constant 32 : index
    %55 = vector.load %arg8[%c0_30, %c0_31, %c32] : memref<1x128x128xbf16, #tpu.memory_space<vmem>>, vector<1x128x32xbf16>
    tpu.vector_store %arg8[%c0_30, %c0_31, %c32], %54 {strides = array<i32>} : memref<1x128x128xbf16, #tpu.memory_space<vmem>>, vector<1x128x32xbf16>,
    %56 = arith.mulf %7, %51 : vector<1x128x32xf32>
    %57 = arith.truncf %56 : vector<1x128x32xf32> to vector<1x128x32xbf16>
    %c0_32 = arith.constant 0 : index
    %c0_33 = arith.constant 0 : index
    %c64 = arith.constant 64 : index
    %58 = vector.load %arg8[%c0_32, %c0_33, %c64] : memref<1x128x128xbf16, #tpu.memory_space<vmem>>, vector<1x128x32xbf16>
    tpu.vector_store %arg8[%c0_32, %c0_33, %c64], %57 {strides = array<i32>} : memref<1x128x128xbf16, #tpu.memory_space<vmem>>, vector<1x128x32xbf16>,
    %59 = arith.mulf %7, %52 : vector<1x128x32xf32>
    %60 = arith.truncf %59 : vector<1x128x32xf32> to vector<1x128x32xbf16>
    %c0_34 = arith.constant 0 : index
    %c0_35 = arith.constant 0 : index
    %c96 = arith.constant 96 : index
    %61 = vector.load %arg8[%c0_34, %c0_35, %c96] : memref<1x128x128xbf16, #tpu.memory_space<vmem>>, vector<1x128x32xbf16>
    tpu.vector_store %arg8[%c0_34, %c0_35, %c96], %60 {strides = array<i32>} : memref<1x128x128xbf16, #tpu.memory_space<vmem>>, vector<1x128x32xbf16>,
    return
  }
  func.func @transform_0(%arg0: i32) -> (i32, i32, i32) {
    %c0_i32 = arith.constant 0 : i32
    %c0_i32_0 = arith.constant 0 : i32
    %c0_i32_1 = arith.constant 0 : i32
    return %arg0, %c0_i32, %c0_i32_0 : i32, i32, i32
  }
  func.func @transform_1(%arg0: i32) -> (i32, i32, i32) {
    %c0_i32 = arith.constant 0 : i32
    %c0_i32_0 = arith.constant 0 : i32
    %c0_i32_1 = arith.constant 0 : i32
    return %arg0, %c0_i32, %c0_i32_0 : i32, i32, i32
  }
  func.func @transform_2(%arg0: i32) -> (i32, i32, i32) {
    %c0_i32 = arith.constant 0 : i32
    %c0_i32_0 = arith.constant 0 : i32
    %c0_i32_1 = arith.constant 0 : i32
    return %arg0, %c0_i32, %c0_i32_0 : i32, i32, i32
  }
  func.func @transform_3(%arg0: i32) -> (i32, i32, i32) {
    %c0_i32 = arith.constant 0 : i32
    %c0_i32_0 = arith.constant 0 : i32
    %c0_i32_1 = arith.constant 0 : i32
    return %arg0, %c0_i32, %c0_i32_0 : i32, i32, i32
  }
  func.func @transform_4(%arg0: i32) -> (i32, i32, i32) {
    %c0_i32 = arith.constant 0 : i32
    %c0_i32_0 = arith.constant 0 : i32
    %c0_i32_1 = arith.constant 0 : i32
    %c0_i32_2 = arith.constant 0 : i32
    return %c0_i32, %c0_i32_0, %c0_i32_1 : i32, i32, i32
  }
  func.func @transform_5(%arg0: i32) -> (i32, i32, i32) {
    %c0_i32 = arith.constant 0 : i32
    %c0_i32_0 = arith.constant 0 : i32
    %c0_i32_1 = arith.constant 0 : i32
    %c0_i32_2 = arith.constant 0 : i32
    return %c0_i32, %c0_i32_0, %c0_i32_1 : i32, i32, i32
  }
  func.func @transform_6(%arg0: i32) -> (i32, i32, i32) {
    %c0_i32 = arith.constant 0 : i32
    %c0_i32_0 = arith.constant 0 : i32
    %c0_i32_1 = arith.constant 0 : i32
    %c0_i32_2 = arith.constant 0 : i32
    return %c0_i32, %c0_i32_0, %c0_i32_1 : i32, i32, i32
  }
  func.func @transform_7(%arg0: i32) -> (i32, i32, i32) {
    %c0_i32 = arith.constant 0 : i32
    %c0_i32_0 = arith.constant 0 : i32
    %c0_i32_1 = arith.constant 0 : i32
    return %arg0, %c0_i32, %c0_i32_0 : i32, i32, i32
  }
}

</mosaic_0001>

<llo_original>
// kernel: tpu_custom_call.1
$region0: #{tpu_custom_call.1}
  #allocation0 [shape = 'u32[]', space=smem, size = 0x4, offset = 0x4, fixed_abs, tag = 'smem constant byte address 0x4 - core index']
  #allocation1 [shape = 'u32[144,128]{1,0:T(1,128)}', space=vmem, size = 0x12000, scoped, tag = 'internal scratch']
  %s0 = inlined_call_operand.hbm [shape: bf16[2,128,32], index: 0, kind: input, shape index: {}]
  %s1 = inlined_call_operand.hbm [shape: bf16[2,128,32], index: 1, kind: input, shape index: {}]
  %s2 = inlined_call_operand.hbm [shape: f32[2,1,128], index: 2, kind: input, shape index: {}]
  %s3 = inlined_call_operand.hbm [shape: f32[2,1,128], index: 3, kind: input, shape index: {}]
  %s4 = inlined_call_operand.hbm [shape: f32[1,1,32], index: 4, kind: input, shape index: {}]
  %s5 = inlined_call_operand.hbm [shape: f32[1,1,32], index: 5, kind: input, shape index: {}]
  %s6 = inlined_call_operand.hbm [shape: f32[1,1,32], index: 6, kind: input, shape index: {}]
  %s7 = inlined_call_operand.hbm [shape: bf16[2,128,128], index: 7, kind: output, shape index: {}]
  %s8 = sld [smem:[#allocation0]]
  $region89: #{tpu_custom_call.1} parent=0
    _
  %s10 = ssub.s32 1, %s8
  %s11 = scalar_select 0, %s10, %s8
  $region1: #{tpu_custom_call.1} parent=0
    #allocation2 [shape = 'u8[65536]{0}', space=vmem, size = 0x10000, scoped, tag = 'input window, operand 0']
    #allocation3 [shape = 's32[2]{0}', space=sflag, size = 0x8, scoped, tag = 'scoped memory for tpu_custom_call.1']
    #allocation4 [shape = 's32[2]{0}', space=sflag, size = 0x8, scoped, tag = 'scoped memory for tpu_custom_call.1']
    #allocation5 [shape = 'u8[65536]{0}', space=vmem, size = 0x10000, scoped, tag = 'input window, operand 1']
    #allocation6 [shape = 's32[2]{0}', space=sflag, size = 0x8, scoped, tag = 'scoped memory for tpu_custom_call.1']
    #allocation7 [shape = 'u8[1024]{0}', space=vmem, size = 0x400, scoped, tag = 'input window, operand 2']
    #allocation8 [shape = 'u8[1024]{0}', space=vmem, size = 0x400, scoped, tag = 'input window, operand 3']
    #allocation9 [shape = 's32[2]{0}', space=sflag, size = 0x8, scoped, tag = 'scoped memory for tpu_custom_call.1']
    #allocation10 [shape = 'u8[512]{0}', space=vmem, size = 0x400, scoped, tag = 'input window, operand 4, single buffered']
    #allocation11 [shape = 'u8[512]{0}', space=vmem, size = 0x400, scoped, tag = 'input window, operand 5, single buffered']
    #allocation12 [shape = 's32[1]{0}', space=sflag, size = 0x4, scoped, tag = 'scoped memory for tpu_custom_call.1']
    #allocation13 [shape = 'u8[512]{0}', space=vmem, size = 0x400, scoped, tag = 'input window, operand 6, single buffered']
    #allocation14 [shape = 'u8[65536]{0}', space=vmem, size = 0x10000, scoped, tag = 'output window, operand 0']
    %12 = vsyncpa [#allocation3], 0
    %s13 = scalar_lea.sflag [#allocation3], 1
    %14 = vsyncpa %s13, 0
    %15 = vsyncpa [#allocation6], 0
    %s16 = scalar_lea.sflag [#allocation6], 1
    %17 = vsyncpa %s16, 0
    %18 = vsyncpa [#allocation9], 0
    %s19 = scalar_lea.sflag [#allocation9], 1
    %20 = vsyncpa %s19, 0
    %21 = vsyncpa [#allocation12], 0
    %22 = vsyncpa [#allocation4], 0
    %s23 = scalar_lea.sflag [#allocation4], 1
    %24 = vsyncpa %s23, 0
    loop: start=0, step=1, limit=4
    $region2: #{tpu_custom_call.1} parent=1 // loop_pre_header
      _
    $region3: #{tpu_custom_call.1} parent=1 // loop_header
      %s26 = sphi 0, %s30
      %p27 = scmp.ge.s32.totalorder %s26, 4
      %s36 = sphi 0, %s38
      %s39 = sphi 0, %s36
      %s40 = sphi 0, %s39
      %s56 = sphi 0, %s40
      %s62 = sphi 0, %s64
      %s65 = sphi 0, %s62
      %s66 = sphi 0, %s65
      %s82 = sphi 0, %s66
      %s88 = sphi 0, %s90
      %s91 = sphi 0, %s88
      %s92 = sphi 0, %s91
      %s108 = sphi 0, %s92
      %s114 = sphi 0, %s116
      %s117 = sphi 0, %s114
      %s118 = sphi 0, %s117
      %s134 = sphi 0, %s118
      %s138 = sphi 0, %s138
      %s140 = sphi 0, %s138
      %s141 = sphi 0, %s140
      %s155 = sphi 0, %s141
      %s159 = sphi 0, %s159
      %s161 = sphi 0, %s159
      %s162 = sphi 0, %s161
      %s176 = sphi 0, %s162
      %s180 = sphi 0, %s180
      %s182 = sphi 0, %s180
      %s183 = sphi 0, %s182
      %s197 = sphi 0, %s183
      %s203 = sphi 0, %s205
      %s206 = sphi 0, %s203
      %s207 = sphi 0, %s206
      %s223 = sphi 0, %s207
    $region4: #{tpu_custom_call.1} parent=1 // loop_header_branch
      %29 = sbr.rel (%p27) target = $region8
    $region5: #{tpu_custom_call.1} parent=1 // loop_body
      %s31 = ssub.s32 %s26, 1
      %s32 = ssub.s32 %s26, 2
      %s33 = sadd.s32 %s26, 1
      %s34 = ssub.s32 %s26, %s33
      %p35 = scmp.eq.s32.totalorder %s34, 0
      %s37 = sadd.s32 %s36, 1
      %s38 = scalar_select %p35, %s36, %s37
      %p41 = pneg %p35
      %p42 = scmp.eq.s32.totalorder %s26, 1
      %p43 = por %p41, %p42
      %p44 = scmp.ne.s32.totalorder %s36, %s39
      %p45 = scmp.eq.s32.totalorder %s26, 0
      %p46 = por %p44, %p45
      %p47 = scmp.ne.s32.totalorder %s36, %s39
      %p48 = scmp.eq.s32.totalorder %s31, 1
      %p49 = por %p47, %p48
      %p50 = scmp.ne.s32.totalorder %s39, %s40
      %p51 = scmp.eq.s32.totalorder %s31, 0
      %p52 = por %p50, %p51
      %p53 = scmp.ne.s32.totalorder %s39, %s40
      %p54 = scmp.eq.s32.totalorder %s32, 1
      %p55 = por %p53, %p54
      %p57 = scmp.ne.s32.totalorder %s40, %s56
      %p58 = scmp.eq.s32.totalorder %s32, 0
      %p59 = por %p57, %p58
      %s60 = ssub.s32 %s26, %s33
      %p61 = scmp.eq.s32.totalorder %s60, 0
      %s63 = sadd.s32 %s62, 1
      %s64 = scalar_select %p61, %s62, %s63
      %p67 = pneg %p61
      %p68 = scmp.eq.s32.totalorder %s26, 1
      %p69 = por %p67, %p68
      %p70 = scmp.ne.s32.totalorder %s62, %s65
      %p71 = scmp.eq.s32.totalorder %s26, 0
      %p72 = por %p70, %p71
      %p73 = scmp.ne.s32.totalorder %s62, %s65
      %p74 = scmp.eq.s32.totalorder %s31, 1
      %p75 = por %p73, %p74
      %p76 = scmp.ne.s32.totalorder %s65, %s66
      %p77 = scmp.eq.s32.totalorder %s31, 0
      %p78 = por %p76, %p77
      %p79 = scmp.ne.s32.totalorder %s65, %s66
      %p80 = scmp.eq.s32.totalorder %s32, 1
      %p81 = por %p79, %p80
      %p83 = scmp.ne.s32.totalorder %s66, %s82
      %p84 = scmp.eq.s32.totalorder %s32, 0
      %p85 = por %p83, %p84
      %s86 = ssub.s32 %s26, %s33
      %p87 = scmp.eq.s32.totalorder %s86, 0
      %s89 = sadd.s32 %s88, 1
      %s90 = scalar_select %p87, %s88, %s89
      %p93 = pneg %p87
      %p94 = scmp.eq.s32.totalorder %s26, 1
      %p95 = por %p93, %p94
      %p96 = scmp.ne.s32.totalorder %s88, %s91
      %p97 = scmp.eq.s32.totalorder %s26, 0
      %p98 = por %p96, %p97
      %p99 = scmp.ne.s32.totalorder %s88, %s91
      %p100 = scmp.eq.s32.totalorder %s31, 1
      %p101 = por %p99, %p100
      %p102 = scmp.ne.s32.totalorder %s91, %s92
      %p103 = scmp.eq.s32.totalorder %s31, 0
      %p104 = por %p102, %p103
      %p105 = scmp.ne.s32.totalorder %s91, %s92
      %p106 = scmp.eq.s32.totalorder %s32, 1
      %p107 = por %p105, %p106
      %p109 = scmp.ne.s32.totalorder %s92, %s108
      %p110 = scmp.eq.s32.totalorder %s32, 0
      %p111 = por %p109, %p110
      %s112 = ssub.s32 %s26, %s33
      %p113 = scmp.eq.s32.totalorder %s112, 0
      %s115 = sadd.s32 %s114, 1
      %s116 = scalar_select %p113, %s114, %s115
      %p119 = pneg %p113
      %p120 = scmp.eq.s32.totalorder %s26, 1
      %p121 = por %p119, %p120
      %p122 = scmp.ne.s32.totalorder %s114, %s117
      %p123 = scmp.eq.s32.totalorder %s26, 0
      %p124 = por %p122, %p123
      %p125 = scmp.ne.s32.totalorder %s114, %s117
      %p126 = scmp.eq.s32.totalorder %s31, 1
      %p127 = por %p125, %p126
      %p128 = scmp.ne.s32.totalorder %s117, %s118
      %p129 = scmp.eq.s32.totalorder %s31, 0
      %p130 = por %p128, %p129
      %p131 = scmp.ne.s32.totalorder %s117, %s118
      %p132 = scmp.eq.s32.totalorder %s32, 1
      %p133 = por %p131, %p132
      %p135 = scmp.ne.s32.totalorder %s118, %s134
      %p136 = scmp.eq.s32.totalorder %s32, 0
      %p137 = por %p135, %p136
      %s139 = sadd.s32 %s138, 1
      %p142 = scmp.eq.s32.totalorder %s26, 1
      %p143 = scmp.ne.s32.totalorder %s138, %s140
      %p144 = scmp.eq.s32.totalorder %s26, 0
      %p145 = por %p143, %p144
      %p146 = scmp.ne.s32.totalorder %s138, %s140
      %p147 = scmp.eq.s32.totalorder %s31, 1
      %p148 = por %p146, %p147
      %p149 = scmp.ne.s32.totalorder %s140, %s141
      %p150 = scmp.eq.s32.totalorder %s31, 0
      %p151 = por %p149, %p150
      %p152 = scmp.ne.s32.totalorder %s140, %s141
      %p153 = scmp.eq.s32.totalorder %s32, 1
      %p154 = por %p152, %p153
      %p156 = scmp.ne.s32.totalorder %s141, %s155
      %p157 = scmp.eq.s32.totalorder %s32, 0
      %p158 = por %p156, %p157
      %s160 = sadd.s32 %s159, 1
      %p163 = scmp.eq.s32.totalorder %s26, 1
      %p164 = scmp.ne.s32.totalorder %s159, %s161
      %p165 = scmp.eq.s32.totalorder %s26, 0
      %p166 = por %p164, %p165
      %p167 = scmp.ne.s32.totalorder %s159, %s161
      %p168 = scmp.eq.s32.totalorder %s31, 1
      %p169 = por %p167, %p168
      %p170 = scmp.ne.s32.totalorder %s161, %s162
      %p171 = scmp.eq.s32.totalorder %s31, 0
      %p172 = por %p170, %p171
      %p173 = scmp.ne.s32.totalorder %s161, %s162
      %p174 = scmp.eq.s32.totalorder %s32, 1
      %p175 = por %p173, %p174
      %p177 = scmp.ne.s32.totalorder %s162, %s176
      %p178 = scmp.eq.s32.totalorder %s32, 0
      %p179 = por %p177, %p178
      %s181 = sadd.s32 %s180, 1
      %p184 = scmp.eq.s32.totalorder %s26, 1
      %p185 = scmp.ne.s32.totalorder %s180, %s182
      %p186 = scmp.eq.s32.totalorder %s26, 0
      %p187 = por %p185, %p186
      %p188 = scmp.ne.s32.totalorder %s180, %s182
      %p189 = scmp.eq.s32.totalorder %s31, 1
      %p190 = por %p188, %p189
      %p191 = scmp.ne.s32.totalorder %s182, %s183
      %p192 = scmp.eq.s32.totalorder %s31, 0
      %p193 = por %p191, %p192
      %p194 = scmp.ne.s32.totalorder %s182, %s183
      %p195 = scmp.eq.s32.totalorder %s32, 1
      %p196 = por %p194, %p195
      %p198 = scmp.ne.s32.totalorder %s183, %s197
      %p199 = scmp.eq.s32.totalorder %s32, 0
      %p200 = por %p198, %p199
      %s201 = ssub.s32 %s26, %s33
      %p202 = scmp.eq.s32.totalorder %s201, 0
      %s204 = sadd.s32 %s203, 1
      %s205 = scalar_select %p202, %s203, %s204
      %p208 = pneg %p202
      %p209 = scmp.eq.s32.totalorder %s26, 1
      %p210 = por %p208, %p209
      %p211 = scmp.ne.s32.totalorder %s203, %s206
      %p212 = scmp.eq.s32.totalorder %s26, 0
      %p213 = por %p211, %p212
      %p214 = scmp.ne.s32.totalorder %s203, %s206
      %p215 = scmp.eq.s32.totalorder %s31, 1
      %p216 = por %p214, %p215
      %p217 = scmp.ne.s32.totalorder %s206, %s207
      %p218 = scmp.eq.s32.totalorder %s31, 0
      %p219 = por %p217, %p218
      %p220 = scmp.ne.s32.totalorder %s206, %s207
      %p221 = scmp.eq.s32.totalorder %s32, 1
      %p222 = por %p220, %p221
      %p224 = scmp.ne.s32.totalorder %s207, %s223
      %p225 = scmp.eq.s32.totalorder %s32, 0
      %p226 = por %p224, %p225
      %p227 = scmp.le.s32.totalorder 1, %s26
      %p228 = scmp.lt.s32.totalorder %s26, 3
      %p229 = pnand %p227, %p228
      %p230 = pneg %p229
      // Predicated region
      $region9: #{tpu_custom_call.1} parent=5 // pred_check
        _
      $region10: #{tpu_custom_call.1} parent=5 // pred_check_branch
        %232 = sbr.rel (%p229) target = $region12
      $region11: #{tpu_custom_call.1} parent=5 // pred_region
        %s233 = ssub.s32 %s26, 1
        // Predicated region
        $region13: #{tpu_custom_call.1} parent=11 // pred_check
          %p234 = pneg %p151
        $region14: #{tpu_custom_call.1} parent=11 // pred_check_branch
          %236 = sbr.rel (%p234) target = $region16
        $region15: #{tpu_custom_call.1} parent=11 // pred_region
          %s238 = ssub.s32 16, 16
          %239 = vsyncadd [#allocation9], %s238
          %s241 = sshll.u32 [#allocation10], 4
          %s242 = int_to_ptr.vmem [resolvable:$true] %s241
          %244 = dma.hbm_to_vmem [thread:$0]  %s4, 16, %s242, [#allocation9]
        $region16: #{tpu_custom_call.1} parent=11 // pred_fallthru
          _
        // Predicated region
        $region17: #{tpu_custom_call.1} parent=11 // pred_check
          %p245 = pneg %p172
        $region18: #{tpu_custom_call.1} parent=11 // pred_check_branch
          %247 = sbr.rel (%p245) target = $region20
        $region19: #{tpu_custom_call.1} parent=11 // pred_region
          %s249 = ssub.s32 16, 16
          %250 = vsyncadd [#allocation12], %s249
          %s252 = sshll.u32 [#allocation11], 4
          %s253 = int_to_ptr.vmem [resolvable:$true] %s252
          %255 = dma.hbm_to_vmem [thread:$0]  %s5, 16, %s253, [#allocation12]
        $region20: #{tpu_custom_call.1} parent=11 // pred_fallthru
          _
        // Predicated region
        $region21: #{tpu_custom_call.1} parent=11 // pred_check
          %p256 = pneg %p193
        $region22: #{tpu_custom_call.1} parent=11 // pred_check_branch
          %258 = sbr.rel (%p256) target = $region24
        $region23: #{tpu_custom_call.1} parent=11 // pred_region
          %s260 = ssub.s32 16, 16
          %261 = vsyncadd [#allocation12], %s260
          %s263 = sshll.u32 [#allocation13], 4
          %s264 = int_to_ptr.vmem [resolvable:$true] %s263
          %266 = dma.hbm_to_vmem [thread:$0]  %s6, 16, %s264, [#allocation12]
        $region24: #{tpu_custom_call.1} parent=11 // pred_fallthru
          _
      $region12: #{tpu_custom_call.1} parent=5 // pred_fallthru
        _
      %p267 = scmp.lt.s32.totalorder %s26, 2
      // Predicated region
      $region25: #{tpu_custom_call.1} parent=5 // pred_check
        %p268 = pneg %p267
      $region26: #{tpu_custom_call.1} parent=5 // pred_check_branch
        %270 = sbr.rel (%p268) target = $region28
      $region27: #{tpu_custom_call.1} parent=5 // pred_region
        // Predicated region
        $region29: #{tpu_custom_call.1} parent=27 // pred_check
          %p271 = pneg %p46
        $region30: #{tpu_custom_call.1} parent=27 // pred_check_branch
          %273 = sbr.rel (%p271) target = $region32
        $region31: #{tpu_custom_call.1} parent=27 // pred_region
          %s274 = sand.u32 %s36, 1
          %s275 = scalar_lea.sflag [#allocation3], %s274
          %s276 = sand.u32 %s36, 1
          %s277 = smul.addr %s276, 64
          %s278 = scalar_lea.vmem [#allocation2], %s277
          %s280 = ssub.s32 1024, 1024
          %281 = vsyncadd %s275, %s280
          %s282 = smul.addr %s26, 16
          %s283 = smul.addr %s282, 64
          %s284 = scalar_lea.hbm %s0, %s283
          %s285 = sshll.u32 %s278, 4
          %s286 = int_to_ptr.vmem [resolvable:$true] %s285
          %291 = dma.hbm_to_vmem [thread:$0]  %s284, 1024, %s286, %s275, 64, 64, 4
        $region32: #{tpu_custom_call.1} parent=27 // pred_fallthru
          _
        // Predicated region
        $region33: #{tpu_custom_call.1} parent=27 // pred_check
          %p292 = pneg %p72
        $region34: #{tpu_custom_call.1} parent=27 // pred_check_branch
          %294 = sbr.rel (%p292) target = $region36
        $region35: #{tpu_custom_call.1} parent=27 // pred_region
          %s295 = sand.u32 %s26, 1
          %s296 = scalar_lea.sflag [#allocation6], %s295
          %s297 = sand.u32 %s62, 1
          %s298 = smul.addr %s297, 64
          %s299 = scalar_lea.vmem [#allocation5], %s298
          %s301 = ssub.s32 1024, 1024
          %302 = vsyncadd %s296, %s301
          %s303 = smul.addr %s26, 16
          %s304 = smul.addr %s303, 64
          %s305 = scalar_lea.hbm %s1, %s304
          %s306 = sshll.u32 %s299, 4
          %s307 = int_to_ptr.vmem [resolvable:$true] %s306
          %312 = dma.hbm_to_vmem [thread:$0]  %s305, 1024, %s307, %s296, 64, 64, 4
        $region36: #{tpu_custom_call.1} parent=27 // pred_fallthru
          _
        // Predicated region
        $region37: #{tpu_custom_call.1} parent=27 // pred_check
          %p313 = pneg %p98
        $region38: #{tpu_custom_call.1} parent=27 // pred_check_branch
          %315 = sbr.rel (%p313) target = $region40
        $region39: #{tpu_custom_call.1} parent=27 // pred_region
          %s316 = sand.u32 %s26, 1
          %s317 = scalar_lea.sflag [#allocation6], %s316
          %s318 = sand.u32 %s88, 1
          %s319 = scalar_lea.vmem [#allocation7], %s318
          %s321 = ssub.s32 16, 16
          %322 = vsyncadd %s317, %s321
          %s323 = smul.addr %s26, 16
          %s324 = scalar_lea.hbm %s2, %s323
          %s326 = sshll.u32 %s319, 4
          %s327 = int_to_ptr.vmem [resolvable:$true] %s326
          %329 = dma.hbm_to_vmem [thread:$0]  %s324, 16, %s327, %s317
        $region40: #{tpu_custom_call.1} parent=27 // pred_fallthru
          _
        // Predicated region
        $region41: #{tpu_custom_call.1} parent=27 // pred_check
          %p330 = pneg %p124
        $region42: #{tpu_custom_call.1} parent=27 // pred_check_branch
          %332 = sbr.rel (%p330) target = $region44
        $region43: #{tpu_custom_call.1} parent=27 // pred_region
          %s333 = sand.u32 %s26, 1
          %s334 = scalar_lea.sflag [#allocation9], %s333
          %s335 = sand.u32 %s114, 1
          %s336 = scalar_lea.vmem [#allocation8], %s335
          %s338 = ssub.s32 16, 16
          %339 = vsyncadd %s334, %s338
          %s340 = smul.addr %s26, 16
          %s341 = scalar_lea.hbm %s3, %s340
          %s343 = sshll.u32 %s336, 4
          %s344 = int_to_ptr.vmem [resolvable:$true] %s343
          %346 = dma.hbm_to_vmem [thread:$0]  %s341, 16, %s344, %s334
        $region44: #{tpu_custom_call.1} parent=27 // pred_fallthru
          _
      $region28: #{tpu_custom_call.1} parent=5 // pred_fallthru
        _
      %p347 = scmp.le.s32.totalorder 1, %s26
      %p348 = scmp.lt.s32.totalorder %s26, 3
      %p349 = pnand %p347, %p348
      %p350 = pneg %p349
      // Predicated region
      $region45: #{tpu_custom_call.1} parent=5 // pred_check
        _
      $region46: #{tpu_custom_call.1} parent=5 // pred_check_branch
        %352 = sbr.rel (%p349) target = $region48
      $region47: #{tpu_custom_call.1} parent=5 // pred_region
        %s353 = ssub.s32 %s26, 1
        %s354 = sand.u32 %s39, 1
        %s355 = scalar_lea.sflag [#allocation3], %s354
        %s356 = sand.u32 %s39, 1
        %s357 = smul.addr %s356, 64
        %s358 = scalar_lea.vmem [#allocation2], %s357
        // Predicated region
        $region49: #{tpu_custom_call.1} parent=47 // pred_check
          %p359 = pneg %p52
        $region50: #{tpu_custom_call.1} parent=47 // pred_check_branch
          %361 = sbr.rel (%p359) target = $region52
        $region51: #{tpu_custom_call.1} parent=47 // pred_region
          %362 = dma.done %s355, 1024
        $region52: #{tpu_custom_call.1} parent=47 // pred_fallthru
          _
        %s363 = sand.u32 %s31, 1
        %s364 = scalar_lea.sflag [#allocation6], %s363
        %s365 = sand.u32 %s65, 1
        %s366 = smul.addr %s365, 64
        %s367 = scalar_lea.vmem [#allocation5], %s366
        // Predicated region
        $region53: #{tpu_custom_call.1} parent=47 // pred_check
          %p368 = pneg %p78
        $region54: #{tpu_custom_call.1} parent=47 // pred_check_branch
          %370 = sbr.rel (%p368) target = $region56
        $region55: #{tpu_custom_call.1} parent=47 // pred_region
          %371 = dma.done %s364, 1024
        $region56: #{tpu_custom_call.1} parent=47 // pred_fallthru
          _
        %s372 = sand.u32 %s31, 1
        %s373 = scalar_lea.sflag [#allocation6], %s372
        %s374 = sand.u32 %s91, 1
        %s375 = scalar_lea.vmem [#allocation7], %s374
        // Predicated region
        $region57: #{tpu_custom_call.1} parent=47 // pred_check
          %p376 = pneg %p104
        $region58: #{tpu_custom_call.1} parent=47 // pred_check_branch
          %378 = sbr.rel (%p376) target = $region60
        $region59: #{tpu_custom_call.1} parent=47 // pred_region
          %379 = dma.done %s373, 16
        $region60: #{tpu_custom_call.1} parent=47 // pred_fallthru
          _
        %s380 = sand.u32 %s31, 1
        %s381 = scalar_lea.sflag [#allocation9], %s380
        %s382 = sand.u32 %s117, 1
        %s383 = scalar_lea.vmem [#allocation8], %s382
        // Predicated region
        $region61: #{tpu_custom_call.1} parent=47 // pred_check
          %p384 = pneg %p130
        $region62: #{tpu_custom_call.1} parent=47 // pred_check_branch
          %386 = sbr.rel (%p384) target = $region64
        $region63: #{tpu_custom_call.1} parent=47 // pred_region
          %387 = dma.done %s381, 16
        $region64: #{tpu_custom_call.1} parent=47 // pred_fallthru
          _
        // Predicated region
        $region65: #{tpu_custom_call.1} parent=47 // pred_check
          %p388 = pneg %p151
        $region66: #{tpu_custom_call.1} parent=47 // pred_check_branch
          %390 = sbr.rel (%p388) target = $region68
        $region67: #{tpu_custom_call.1} parent=47 // pred_region
          %391 = dma.done [#allocation9], 16
        $region68: #{tpu_custom_call.1} parent=47 // pred_fallthru
          _
        // Predicated region
        $region69: #{tpu_custom_call.1} parent=47 // pred_check
          %p392 = pneg %p172
        $region70: #{tpu_custom_call.1} parent=47 // pred_check_branch
          %394 = sbr.rel (%p392) target = $region72
        $region71: #{tpu_custom_call.1} parent=47 // pred_region
          %395 = dma.done [#allocation12], 16
        $region72: #{tpu_custom_call.1} parent=47 // pred_fallthru
          _
        // Predicated region
        $region73: #{tpu_custom_call.1} parent=47 // pred_check
          %p396 = pneg %p193
        $region74: #{tpu_custom_call.1} parent=47 // pred_check_branch
          %398 = sbr.rel (%p396) target = $region76
        $region75: #{tpu_custom_call.1} parent=47 // pred_region
          %399 = dma.done [#allocation12], 16
        $region76: #{tpu_custom_call.1} parent=47 // pred_fallthru
          _
        %s400 = sand.u32 %s39, 1
        %s401 = scalar_lea.sflag [#allocation3], %s400
        %s402 = sand.u32 %s39, 1
        %s403 = smul.addr %s402, 64
        %s404 = scalar_lea.vmem [#allocation2], %s403
        %p405 = pneg %p52
        %p406 = pneg %p49
        %s407 = sand.u32 %s31, 1
        %s408 = scalar_lea.sflag [#allocation6], %s407
        %s409 = sand.u32 %s65, 1
        %s410 = smul.addr %s409, 64
        %s411 = scalar_lea.vmem [#allocation5], %s410
        %p412 = pneg %p78
        %p413 = pneg %p75
        %s414 = sand.u32 %s31, 1
        %s415 = scalar_lea.sflag [#allocation6], %s414
        %s416 = sand.u32 %s91, 1
        %s417 = scalar_lea.vmem [#allocation7], %s416
        %p418 = pneg %p104
        %p419 = pneg %p101
        %s420 = sand.u32 %s31, 1
        %s421 = scalar_lea.sflag [#allocation9], %s420
        %s422 = sand.u32 %s117, 1
        %s423 = scalar_lea.vmem [#allocation8], %s422
        %p424 = pneg %p130
        %p425 = pneg %p127
        %p426 = pneg %p151
        %p427 = pneg %p148
        %p428 = pneg %p172
        %p429 = pneg %p169
        %p430 = pneg %p193
        %p431 = pneg %p190
        %p432 = pneg %p219
        %p433 = pneg %p216
        %s434 = sand.u32 %s206, 1
        %s435 = scalar_lea.sflag [#allocation4], %s434
        %s436 = sand.u32 %s206, 1
        %s437 = smul.addr %s436, 64
        %s438 = scalar_lea.vmem [#allocation14], %s437
        %v440 = vld [vmem:[%s358] sm:$0xf]
        %v441 = vld [vmem:[%s358 + $0x4] sm:$0xf]
        %v442 = vld [vmem:[%s358 + $0x8] sm:$0xf]
        %v443 = vld [vmem:[%s358 + $0xc] sm:$0xf]
        %v444 = vld [vmem:[%s358 + $0x10] sm:$0xf]
        %v445 = vld [vmem:[%s358 + $0x14] sm:$0xf]
        %v446 = vld [vmem:[%s358 + $0x18] sm:$0xf]
        %v447 = vld [vmem:[%s358 + $0x1c] sm:$0xf]
        %v448 = vld [vmem:[%s358 + $0x20] sm:$0xf]
        %v449 = vld [vmem:[%s358 + $0x24] sm:$0xf]
        %v450 = vld [vmem:[%s358 + $0x28] sm:$0xf]
        %v451 = vld [vmem:[%s358 + $0x2c] sm:$0xf]
        %v452 = vld [vmem:[%s358 + $0x30] sm:$0xf]
        %v453 = vld [vmem:[%s358 + $0x34] sm:$0xf]
        %v454 = vld [vmem:[%s358 + $0x38] sm:$0xf]
        %v455 = vld [vmem:[%s358 + $0x3c] sm:$0xf]
        %v456 = vld [vmem:[%s367] sm:$0xf]
        %v457 = vld [vmem:[%s367 + $0x4] sm:$0xf]
        %v458 = vld [vmem:[%s367 + $0x8] sm:$0xf]
        %v459 = vld [vmem:[%s367 + $0xc] sm:$0xf]
        %v460 = vld [vmem:[%s367 + $0x10] sm:$0xf]
        %v461 = vld [vmem:[%s367 + $0x14] sm:$0xf]
        %v462 = vld [vmem:[%s367 + $0x18] sm:$0xf]
        %v463 = vld [vmem:[%s367 + $0x1c] sm:$0xf]
        %v464 = vld [vmem:[%s367 + $0x20] sm:$0xf]
        %v465 = vld [vmem:[%s367 + $0x24] sm:$0xf]
        %v466 = vld [vmem:[%s367 + $0x28] sm:$0xf]
        %v467 = vld [vmem:[%s367 + $0x2c] sm:$0xf]
        %v468 = vld [vmem:[%s367 + $0x30] sm:$0xf]
        %v469 = vld [vmem:[%s367 + $0x34] sm:$0xf]
        %v470 = vld [vmem:[%s367 + $0x38] sm:$0xf]
        %v471 = vld [vmem:[%s367 + $0x3c] sm:$0xf]
        %v472 = vld [vmem:[%s375] sm:$0x1]
        %v473 = vld [vmem:[%s383] sm:$0x1]
        %v474 = vld [vmem:[#allocation10] sm:$0x1]
        %v475 = vld [vmem:[#allocation11] sm:$0x1]
        %v476 = vld [vmem:[#allocation13] sm:$0x1]
        %v477 = vunpack.c.l.bf16 %v440
        %v478 = vunpack.c.l.bf16 %v441
        %v479 = vunpack.c.l.bf16 %v442
        %v480 = vunpack.c.l.bf16 %v443
        %v481 = vunpack.c.l.bf16 %v444
        %v482 = vunpack.c.l.bf16 %v445
        %v483 = vunpack.c.l.bf16 %v446
        %v484 = vunpack.c.l.bf16 %v447
        %v485 = vunpack.c.l.bf16 %v448
        %v486 = vunpack.c.l.bf16 %v449
        %v487 = vunpack.c.l.bf16 %v450
        %v488 = vunpack.c.l.bf16 %v451
        %v489 = vunpack.c.l.bf16 %v452
        %v490 = vunpack.c.l.bf16 %v453
        %v491 = vunpack.c.l.bf16 %v454
        %v492 = vunpack.c.l.bf16 %v455
        %v494 = vlaneseq
        %v495 = vshrl.u32 %v494, 7
        %v496 = vsub.s32 0, %v495
        %v497 = vrot.slane %v476, %v496
        %v499 = vmul.f32 %v477, %v497
        %v500 = vmul.f32 %v478, %v497
        %v501 = vmul.f32 %v479, %v497
        %v502 = vmul.f32 %v480, %v497
        %v503 = vmul.f32 %v481, %v497
        %v504 = vmul.f32 %v482, %v497
        %v505 = vmul.f32 %v483, %v497
        %v506 = vmul.f32 %v484, %v497
        %v507 = vmul.f32 %v485, %v497
        %v508 = vmul.f32 %v486, %v497
        %v509 = vmul.f32 %v487, %v497
        %v510 = vmul.f32 %v488, %v497
        %v511 = vmul.f32 %v489, %v497
        %v512 = vmul.f32 %v490, %v497
        %v513 = vmul.f32 %v491, %v497
        %v514 = vmul.f32 %v492, %v497
        %v516 = vlaneseq
        %v517 = vshrl.u32 %v516, 7
        %v518 = vsub.s32 0, %v517
        %v519 = vrot.slane %v475, %v518
        %v521 = vadd.f32 %v499, %v519
        %v522 = vadd.f32 %v500, %v519
        %v523 = vadd.f32 %v501, %v519
        %v524 = vadd.f32 %v502, %v519
        %v525 = vadd.f32 %v503, %v519
        %v526 = vadd.f32 %v504, %v519
        %v527 = vadd.f32 %v505, %v519
        %v528 = vadd.f32 %v506, %v519
        %v529 = vadd.f32 %v507, %v519
        %v530 = vadd.f32 %v508, %v519
        %v531 = vadd.f32 %v509, %v519
        %v532 = vadd.f32 %v510, %v519
        %v533 = vadd.f32 %v511, %v519
        %v534 = vadd.f32 %v512, %v519
        %v535 = vadd.f32 %v513, %v519
        %v536 = vadd.f32 %v514, %v519
        %v537 = vpack.c.bf16 %v522, %v521
        %v538 = vpack.c.bf16 %v524, %v523
        %v539 = vpack.c.bf16 %v526, %v525
        %v540 = vpack.c.bf16 %v528, %v527
        %v541 = vpack.c.bf16 %v530, %v529
        %v542 = vpack.c.bf16 %v532, %v531
        %v543 = vpack.c.bf16 %v534, %v533
        %v544 = vpack.c.bf16 %v536, %v535
        %v561 = vunpack.c.l.b16 %v456
        %v562 = vunpack.c.l.b16 %v457
        %v563 = vunpack.c.l.b16 %v458
        %v564 = vunpack.c.l.b16 %v459
        %v565 = vunpack.c.l.b16 %v460
        %v566 = vunpack.c.l.b16 %v461
        %v567 = vunpack.c.l.b16 %v462
        %v568 = vunpack.c.l.b16 %v463
        %v569 = vunpack.c.l.b16 %v464
        %v570 = vunpack.c.l.b16 %v465
        %v571 = vunpack.c.l.b16 %v466
        %v572 = vunpack.c.l.b16 %v467
        %v573 = vunpack.c.l.b16 %v468
        %v574 = vunpack.c.l.b16 %v469
        %v575 = vunpack.c.l.b16 %v470
        %v576 = vunpack.c.l.b16 %v471
        %v577 = vpack.c.b16 %v562, %v561
        %v578 = vpack.c.b16 %v564, %v563
        %v579 = vpack.c.b16 %v566, %v565
        %v580 = vpack.c.b16 %v568, %v567
        %v581 = vpack.c.b16 %v570, %v569
        %v582 = vpack.c.b16 %v572, %v571
        %v583 = vpack.c.b16 %v574, %v573
        %v584 = vpack.c.b16 %v576, %v575
        %vm585 = vcmask 261120
        %v587 = vsel %vm585, %v537, 0
        %v590 = vsel %vm585, %v538, 0
        %v593 = vsel %vm585, %v539, 0
        %v596 = vsel %vm585, %v540, 0
        %v599 = vsel %vm585, %v541, 0
        %v602 = vsel %vm585, %v542, 0
        %v605 = vsel %vm585, %v543, 0
        %v608 = vsel %vm585, %v544, 0
        %v611 = vsel %vm585, %v577, 0
        %v614 = vsel %vm585, %v578, 0
        %v617 = vsel %vm585, %v579, 0
        %v620 = vsel %vm585, %v580, 0
        %v623 = vsel %vm585, %v581, 0
        %v626 = vsel %vm585, %v582, 0
        %v629 = vsel %vm585, %v583, 0
        %v632 = vsel %vm585, %v584, 0
        %634 = vmatprep.subr.bf16.mxu0 0
        %635 = vmatpush1.bf16.xpose.msra.mxu0 %v611
        %636 = vmatprep.subr.bf16.mxu0 0
        %637 = vmatpush1.bf16.xpose.msra.mxu0 %v614
        %638 = vmatprep.subr.bf16.mxu0 0
        %639 = vmatpush1.bf16.xpose.msra.mxu0 %v617
        %640 = vmatprep.subr.bf16.mxu0 0
        %641 = vmatpush1.bf16.xpose.msra.mxu0 %v620
        %642 = vmatprep.subr.bf16.mxu0 0
        %643 = vmatpush1.bf16.xpose.msra.mxu0 %v623
        %644 = vmatprep.subr.bf16.mxu0 0
        %645 = vmatpush1.bf16.xpose.msra.mxu0 %v626
        %646 = vmatprep.subr.bf16.mxu0 0
        %647 = vmatpush1.bf16.xpose.msra.mxu0 %v629
        %648 = vmatprep.subr.bf16.mxu0 0
        %649 = vmatpush1.bf16.xpose.msra.mxu0 %v632
        %650 = vmatprep.subr.bf16.mxu0 0
        %651 = vmatpush1.bf16.xpose.msra.mxu0 0
        %652 = vmatprep.subr.bf16.mxu0 0
        %653 = vmatpush1.bf16.xpose.msra.mxu0 0
        %654 = vmatprep.subr.bf16.mxu0 0
        %655 = vmatpush1.bf16.xpose.msra.mxu0 0
        %656 = vmatprep.subr.bf16.mxu0 0
        %657 = vmatpush1.bf16.xpose.msra.mxu0 0
        %658 = vmatprep.subr.bf16.mxu0 0
        %659 = vmatpush1.bf16.xpose.msra.mxu0 0
        %660 = vmatprep.subr.bf16.mxu0 0
        %661 = vmatpush1.bf16.xpose.msra.mxu0 0
        %662 = vmatprep.subr.bf16.mxu0 0
        %663 = vmatpush1.bf16.xpose.msra.mxu0 0
        %664 = vmatprep.subr.bf16.mxu0 0
        %665 = vmatpush1.bf16.xpose.msra.mxu0 0
        %666 = vmatprep.mubr.bf16.mxu0 0
        %667 = vmatmul.mubr.bf16.gmra.mrb[0].mxu0 %v587
        %v668 = vpop.f32.mrb[0].mxu0
        %v669 = vadd.f32 0.0, %v668
        %v670 = vpop.f32.mrb[0].mxu0
        %v671 = vpop.f32.mrb[0].mxu0
        %v672 = vadd.f32 0.0, %v671
        %v673 = vpop.f32.mrb[0].mxu0
        %674 = vmatprep.mubr.bf16.mxu0 0
        %675 = vmatmul.mubr.bf16.gmra.mrb[0].mxu0 %v590
        %v676 = vpop.f32.mrb[0].mxu0
        %v677 = vadd.f32 0.0, %v676
        %v678 = vpop.f32.mrb[0].mxu0
        %v679 = vpop.f32.mrb[0].mxu0
        %v680 = vadd.f32 0.0, %v679
        %v681 = vpop.f32.mrb[0].mxu0
        %682 = vmatprep.mubr.bf16.mxu0 0
        %683 = vmatmul.mubr.bf16.gmra.mrb[0].mxu0 %v593
        %v684 = vpop.f32.mrb[0].mxu0
        %v685 = vadd.f32 0.0, %v684
        %v686 = vpop.f32.mrb[0].mxu0
        %v687 = vpop.f32.mrb[0].mxu0
        %v688 = vadd.f32 0.0, %v687
        %v689 = vpop.f32.mrb[0].mxu0
        %690 = vmatprep.mubr.bf16.mxu0 0
        %691 = vmatmul.mubr.bf16.gmra.mrb[0].mxu0 %v596
        %v692 = vpop.f32.mrb[0].mxu0
        %v693 = vadd.f32 0.0, %v692
        %v694 = vpop.f32.mrb[0].mxu0
        %v695 = vpop.f32.mrb[0].mxu0
        %v696 = vadd.f32 0.0, %v695
        %v697 = vpop.f32.mrb[0].mxu0
        %698 = vmatprep.mubr.bf16.mxu0 0
        %699 = vmatmul.mubr.bf16.gmra.mrb[0].mxu0 %v599
        %v700 = vpop.f32.mrb[0].mxu0
        %v701 = vadd.f32 0.0, %v700
        %v702 = vpop.f32.mrb[0].mxu0
        %v703 = vpop.f32.mrb[0].mxu0
        %v704 = vadd.f32 0.0, %v703
        %v705 = vpop.f32.mrb[0].mxu0
        %706 = vmatprep.mubr.bf16.mxu0 0
        %707 = vmatmul.mubr.bf16.gmra.mrb[0].mxu0 %v602
        %v708 = vpop.f32.mrb[0].mxu0
        %v709 = vadd.f32 0.0, %v708
        %v710 = vpop.f32.mrb[0].mxu0
        %v711 = vpop.f32.mrb[0].mxu0
        %v712 = vadd.f32 0.0, %v711
        %v713 = vpop.f32.mrb[0].mxu0
        %714 = vmatprep.mubr.bf16.mxu0 0
        %715 = vmatmul.mubr.bf16.gmra.mrb[0].mxu0 %v605
        %v716 = vpop.f32.mrb[0].mxu0
        %v717 = vadd.f32 0.0, %v716
        %v718 = vpop.f32.mrb[0].mxu0
        %v719 = vpop.f32.mrb[0].mxu0
        %v720 = vadd.f32 0.0, %v719
        %v721 = vpop.f32.mrb[0].mxu0
        %722 = vmatprep.mubr.bf16.mxu0 0
        %723 = vmatmul.mubr.bf16.gmra.mrb[0].mxu0 %v608
        %v724 = vpop.f32.mrb[0].mxu0
        %v725 = vadd.f32 0.0, %v724
        %v726 = vpop.f32.mrb[0].mxu0
        %v727 = vpop.f32.mrb[0].mxu0
        %v728 = vadd.f32 0.0, %v727
        %v729 = vpop.f32.mrb[0].mxu0
        %730 = vdwg.mxu0
        %v732 = vlaneseq
        %v733 = vshrl.u32 %v732, 7
        %v734 = vsub.s32 0, %v733
        %v735 = vrot.slane %v473, %v734
        %v737 = vadd.f32 %v669, %v735
        %v738 = vadd.f32 %v672, %v735
        %v739 = vadd.f32 %v677, %v735
        %v740 = vadd.f32 %v680, %v735
        %v741 = vadd.f32 %v685, %v735
        %v742 = vadd.f32 %v688, %v735
        %v743 = vadd.f32 %v693, %v735
        %v744 = vadd.f32 %v696, %v735
        %v745 = vadd.f32 %v701, %v735
        %v746 = vadd.f32 %v704, %v735
        %v747 = vadd.f32 %v709, %v735
        %v748 = vadd.f32 %v712, %v735
        %v749 = vadd.f32 %v717, %v735
        %v750 = vadd.f32 %v720, %v735
        %v751 = vadd.f32 %v725, %v735
        %v752 = vadd.f32 %v728, %v735
        %753 = vmax.xlane.f32.xlu0 %v737
        %v754 = vpop.xlane.xlu0 %753
        %755 = vmax.xlane.f32.xlu0 %v738
        %v756 = vpop.xlane.xlu0 %755
        %757 = vmax.xlane.f32.xlu0 %v739
        %v758 = vpop.xlane.xlu0 %757
        %759 = vmax.xlane.f32.xlu0 %v740
        %v760 = vpop.xlane.xlu0 %759
        %761 = vmax.xlane.f32.xlu0 %v741
        %v762 = vpop.xlane.xlu0 %761
        %763 = vmax.xlane.f32.xlu0 %v742
        %v764 = vpop.xlane.xlu0 %763
        %765 = vmax.xlane.f32.xlu0 %v743
        %v766 = vpop.xlane.xlu0 %765
        %767 = vmax.xlane.f32.xlu0 %v744
        %v768 = vpop.xlane.xlu0 %767
        %769 = vmax.xlane.f32.xlu0 %v745
        %v770 = vpop.xlane.xlu0 %769
        %771 = vmax.xlane.f32.xlu0 %v746
        %v772 = vpop.xlane.xlu0 %771
        %773 = vmax.xlane.f32.xlu0 %v747
        %v774 = vpop.xlane.xlu0 %773
        %775 = vmax.xlane.f32.xlu0 %v748
        %v776 = vpop.xlane.xlu0 %775
        %777 = vmax.xlane.f32.xlu0 %v749
        %v778 = vpop.xlane.xlu0 %777
        %779 = vmax.xlane.f32.xlu0 %v750
        %v780 = vpop.xlane.xlu0 %779
        %781 = vmax.xlane.f32.xlu0 %v751
        %v782 = vpop.xlane.xlu0 %781
        %783 = vmax.xlane.f32.xlu0 %v752
        %v784 = vpop.xlane.xlu0 %783
        %v785 = vsub.f32 %v737, %v754
        %v786 = vsub.f32 %v738, %v756
        %v787 = vsub.f32 %v739, %v758
        %v788 = vsub.f32 %v740, %v760
        %v789 = vsub.f32 %v741, %v762
        %v790 = vsub.f32 %v742, %v764
        %v791 = vsub.f32 %v743, %v766
        %v792 = vsub.f32 %v744, %v768
        %v793 = vsub.f32 %v745, %v770
        %v794 = vsub.f32 %v746, %v772
        %v795 = vsub.f32 %v747, %v774
        %v796 = vsub.f32 %v748, %v776
        %v797 = vsub.f32 %v749, %v778
        %v798 = vsub.f32 %v750, %v780
        %v799 = vsub.f32 %v751, %v782
        %v800 = vsub.f32 %v752, %v784
        %v801 = vmul.f32 %v785, 1.442695
        %v802 = vpow.pop %v801
        %v803 = vmul.f32 %v786, 1.442695
        %v804 = vpow.pop %v803
        %v805 = vmul.f32 %v787, 1.442695
        %v806 = vpow.pop %v805
        %v807 = vmul.f32 %v788, 1.442695
        %v808 = vpow.pop %v807
        %v809 = vmul.f32 %v789, 1.442695
        %v810 = vpow.pop %v809
        %v811 = vmul.f32 %v790, 1.442695
        %v812 = vpow.pop %v811
        %v813 = vmul.f32 %v791, 1.442695
        %v814 = vpow.pop %v813
        %v815 = vmul.f32 %v792, 1.442695
        %v816 = vpow.pop %v815
        %v817 = vmul.f32 %v793, 1.442695
        %v818 = vpow.pop %v817
        %v819 = vmul.f32 %v794, 1.442695
        %v820 = vpow.pop %v819
        %v821 = vmul.f32 %v795, 1.442695
        %v822 = vpow.pop %v821
        %v823 = vmul.f32 %v796, 1.442695
        %v824 = vpow.pop %v823
        %v825 = vmul.f32 %v797, 1.442695
        %v826 = vpow.pop %v825
        %v827 = vmul.f32 %v798, 1.442695
        %v828 = vpow.pop %v827
        %v829 = vmul.f32 %v799, 1.442695
        %v830 = vpow.pop %v829
        %v831 = vmul.f32 %v800, 1.442695
        %v832 = vpow.pop %v831
        %833 = vadd.xlane.f32.xlu0 %v802
        %v834 = vpop.xlane.xlu0 %833
        %835 = vadd.xlane.f32.xlu0 %v804
        %v836 = vpop.xlane.xlu0 %835
        %837 = vadd.xlane.f32.xlu0 %v806
        %v838 = vpop.xlane.xlu0 %837
        %839 = vadd.xlane.f32.xlu0 %v808
        %v840 = vpop.xlane.xlu0 %839
        %841 = vadd.xlane.f32.xlu0 %v810
        %v842 = vpop.xlane.xlu0 %841
        %843 = vadd.xlane.f32.xlu0 %v812
        %v844 = vpop.xlane.xlu0 %843
        %845 = vadd.xlane.f32.xlu0 %v814
        %v846 = vpop.xlane.xlu0 %845
        %847 = vadd.xlane.f32.xlu0 %v816
        %v848 = vpop.xlane.xlu0 %847
        %849 = vadd.xlane.f32.xlu0 %v818
        %v850 = vpop.xlane.xlu0 %849
        %851 = vadd.xlane.f32.xlu0 %v820
        %v852 = vpop.xlane.xlu0 %851
        %853 = vadd.xlane.f32.xlu0 %v822
        %v854 = vpop.xlane.xlu0 %853
        %855 = vadd.xlane.f32.xlu0 %v824
        %v856 = vpop.xlane.xlu0 %855
        %857 = vadd.xlane.f32.xlu0 %v826
        %v858 = vpop.xlane.xlu0 %857
        %859 = vadd.xlane.f32.xlu0 %v828
        %v860 = vpop.xlane.xlu0 %859
        %861 = vadd.xlane.f32.xlu0 %v830
        %v862 = vpop.xlane.xlu0 %861
        %863 = vadd.xlane.f32.xlu0 %v832
        %v864 = vpop.xlane.xlu0 %863
        %v865 = vrcp.pop %v834
        %v866 = vrcp.pop %v836
        %v867 = vrcp.pop %v838
        %v868 = vrcp.pop %v840
        %v869 = vrcp.pop %v842
        %v870 = vrcp.pop %v844
        %v871 = vrcp.pop %v846
        %v872 = vrcp.pop %v848
        %v873 = vrcp.pop %v850
        %v874 = vrcp.pop %v852
        %v875 = vrcp.pop %v854
        %v876 = vrcp.pop %v856
        %v877 = vrcp.pop %v858
        %v878 = vrcp.pop %v860
        %v879 = vrcp.pop %v862
        %v880 = vrcp.pop %v864
        %v881 = vmul.f32 %v802, %v865
        %v882 = vmul.f32 %v804, %v866
        %v883 = vmul.f32 %v806, %v867
        %v884 = vmul.f32 %v808, %v868
        %v885 = vmul.f32 %v810, %v869
        %v886 = vmul.f32 %v812, %v870
        %v887 = vmul.f32 %v814, %v871
        %v888 = vmul.f32 %v816, %v872
        %v889 = vmul.f32 %v818, %v873
        %v890 = vmul.f32 %v820, %v874
        %v891 = vmul.f32 %v822, %v875
        %v892 = vmul.f32 %v824, %v876
        %v893 = vmul.f32 %v826, %v877
        %v894 = vmul.f32 %v828, %v878
        %v895 = vmul.f32 %v830, %v879
        %v896 = vmul.f32 %v832, %v880
        %v897 = vpack.c.bf16 %v882, %v881
        %v898 = vpack.c.bf16 %v884, %v883
        %v899 = vpack.c.bf16 %v886, %v885
        %v900 = vpack.c.bf16 %v888, %v887
        %v901 = vpack.c.bf16 %v890, %v889
        %v902 = vpack.c.bf16 %v892, %v891
        %v903 = vpack.c.bf16 %v894, %v893
        %v904 = vpack.c.bf16 %v896, %v895
        %v906 = vlaneseq
        %v907 = vshrl.u32 %v906, 7
        %v908 = vsub.s32 0, %v907
        %v909 = vrot.slane %v474, %v908
        %v911 = vmul.f32 %v477, %v909
        %v912 = vmul.f32 %v478, %v909
        %v913 = vmul.f32 %v479, %v909
        %v914 = vmul.f32 %v480, %v909
        %v915 = vmul.f32 %v481, %v909
        %v916 = vmul.f32 %v482, %v909
        %v917 = vmul.f32 %v483, %v909
        %v918 = vmul.f32 %v484, %v909
        %v919 = vmul.f32 %v485, %v909
        %v920 = vmul.f32 %v486, %v909
        %v921 = vmul.f32 %v487, %v909
        %v922 = vmul.f32 %v488, %v909
        %v923 = vmul.f32 %v489, %v909
        %v924 = vmul.f32 %v490, %v909
        %v925 = vmul.f32 %v491, %v909
        %v926 = vmul.f32 %v492, %v909
        %v927 = vsel %vm585, %v911, 0.0
        %928 = vadd.xlane.f32.xlu0 %v927
        %v929 = vpop.xlane.xlu0 %928
        %v930 = vsel %vm585, %v912, 0.0
        %931 = vadd.xlane.f32.xlu0 %v930
        %v932 = vpop.xlane.xlu0 %931
        %v933 = vsel %vm585, %v913, 0.0
        %934 = vadd.xlane.f32.xlu0 %v933
        %v935 = vpop.xlane.xlu0 %934
        %v936 = vsel %vm585, %v914, 0.0
        %937 = vadd.xlane.f32.xlu0 %v936
        %v938 = vpop.xlane.xlu0 %937
        %v939 = vsel %vm585, %v915, 0.0
        %940 = vadd.xlane.f32.xlu0 %v939
        %v941 = vpop.xlane.xlu0 %940
        %v942 = vsel %vm585, %v916, 0.0
        %943 = vadd.xlane.f32.xlu0 %v942
        %v944 = vpop.xlane.xlu0 %943
        %v945 = vsel %vm585, %v917, 0.0
        %946 = vadd.xlane.f32.xlu0 %v945
        %v947 = vpop.xlane.xlu0 %946
        %v948 = vsel %vm585, %v918, 0.0
        %949 = vadd.xlane.f32.xlu0 %v948
        %v950 = vpop.xlane.xlu0 %949
        %v951 = vsel %vm585, %v919, 0.0
        %952 = vadd.xlane.f32.xlu0 %v951
        %v953 = vpop.xlane.xlu0 %952
        %v954 = vsel %vm585, %v920, 0.0
        %955 = vadd.xlane.f32.xlu0 %v954
        %v956 = vpop.xlane.xlu0 %955
        %v957 = vsel %vm585, %v921, 0.0
        %958 = vadd.xlane.f32.xlu0 %v957
        %v959 = vpop.xlane.xlu0 %958
        %v960 = vsel %vm585, %v922, 0.0
        %961 = vadd.xlane.f32.xlu0 %v960
        %v962 = vpop.xlane.xlu0 %961
        %v963 = vsel %vm585, %v923, 0.0
        %964 = vadd.xlane.f32.xlu0 %v963
        %v965 = vpop.xlane.xlu0 %964
        %v966 = vsel %vm585, %v924, 0.0
        %967 = vadd.xlane.f32.xlu0 %v966
        %v968 = vpop.xlane.xlu0 %967
        %v969 = vsel %vm585, %v925, 0.0
        %970 = vadd.xlane.f32.xlu0 %v969
        %v971 = vpop.xlane.xlu0 %970
        %v972 = vsel %vm585, %v926, 0.0
        %973 = vadd.xlane.f32.xlu0 %v972
        %v974 = vpop.xlane.xlu0 %973
        %975 = vxpose.xlu0.b32.start [1/16] %v669, 128
        %976 = vxpose.xlu0.b32.cont [2/16] %v672, 128
        %977 = vxpose.xlu0.b32.cont [3/16] %v677, 128
        %978 = vxpose.xlu0.b32.cont [4/16] %v680, 128
        %979 = vxpose.xlu0.b32.cont [5/16] %v685, 128
        %980 = vxpose.xlu0.b32.cont [6/16] %v688, 128
        %981 = vxpose.xlu0.b32.cont [7/16] %v693, 128
        %982 = vxpose.xlu0.b32.cont [8/16] %v696, 128
        %983 = vxpose.xlu0.b32.cont [9/16] %v701, 128
        %984 = vxpose.xlu0.b32.cont [10/16] %v704, 128
        %985 = vxpose.xlu0.b32.cont [11/16] %v709, 128
        %986 = vxpose.xlu0.b32.cont [12/16] %v712, 128
        %987 = vxpose.xlu0.b32.cont [13/16] %v717, 128
        %988 = vxpose.xlu0.b32.cont [14/16] %v720, 128
        %989 = vxpose.xlu0.b32.cont [15/16] %v725, 128
        %990 = vxpose.xlu0.b32.end [16/16] %v728, 128
        %v991 = vpop.trf.xlu0
        %v992 = vpop.trf.xlu0
        %v993 = vpop.trf.xlu0
        %v994 = vpop.trf.xlu0
        %v995 = vpop.trf.xlu0
        %v996 = vpop.trf.xlu0
        %v997 = vpop.trf.xlu0
        %v998 = vpop.trf.xlu0
        %v999 = vpop.trf.xlu0
        %v1000 = vpop.trf.xlu0
        %v1001 = vpop.trf.xlu0
        %v1002 = vpop.trf.xlu0
        %v1003 = vpop.trf.xlu0
        %v1004 = vpop.trf.xlu0
        %v1005 = vpop.trf.xlu0
        %v1006 = vpop.trf.xlu0
        %v1023 = vlaneseq
        %v1024 = vand.u32 %v1023, 127
        %v1025 = vlaneseq
        %v1026 = vshrl.u32 %v1025, 7
        %v1027 = vsub.s32 %v1024, %v1026
        %v1028 = vrot.slane %v929, %v1027
        %v1029 = vadd.s32 %v1024, 4294967288
        %v1030 = vlaneseq
        %v1031 = vshrl.u32 %v1030, 7
        %v1032 = vsub.s32 %v1029, %v1031
        %v1033 = vrot.slane %v932, %v1032
        %vm1034 = vcmask 130112
        %v1035 = vsel %vm1034, %v1033, %v1028
        %v1036 = vadd.s32 %v1024, 4294967280
        %v1037 = vlaneseq
        %v1038 = vshrl.u32 %v1037, 7
        %v1039 = vsub.s32 %v1036, %v1038
        %v1040 = vrot.slane %v935, %v1039
        %vm1041 = vcmask 195712
        %v1042 = vsel %vm1041, %v1040, %v1035
        %v1043 = vadd.s32 %v1024, 4294967272
        %v1044 = vlaneseq
        %v1045 = vshrl.u32 %v1044, 7
        %v1046 = vsub.s32 %v1043, %v1045
        %v1047 = vrot.slane %v938, %v1046
        %vm1048 = vcmask 261312
        %v1049 = vsel %vm1048, %v1047, %v1042
        %v1050 = vadd.s32 %v1024, 4294967264
        %v1051 = vlaneseq
        %v1052 = vshrl.u32 %v1051, 7
        %v1053 = vsub.s32 %v1050, %v1052
        %v1054 = vrot.slane %v941, %v1053
        %vm1055 = vcmask 326912
        %v1056 = vsel %vm1055, %v1054, %v1049
        %v1057 = vadd.s32 %v1024, 4294967256
        %v1058 = vlaneseq
        %v1059 = vshrl.u32 %v1058, 7
        %v1060 = vsub.s32 %v1057, %v1059
        %v1061 = vrot.slane %v944, %v1060
        %vm1062 = vcmask 392512
        %v1063 = vsel %vm1062, %v1061, %v1056
        %v1064 = vadd.s32 %v1024, 4294967248
        %v1065 = vlaneseq
        %v1066 = vshrl.u32 %v1065, 7
        %v1067 = vsub.s32 %v1064, %v1066
        %v1068 = vrot.slane %v947, %v1067
        %vm1069 = vcmask 458112
        %v1070 = vsel %vm1069, %v1068, %v1063
        %v1071 = vadd.s32 %v1024, 4294967240
        %v1072 = vlaneseq
        %v1073 = vshrl.u32 %v1072, 7
        %v1074 = vsub.s32 %v1071, %v1073
        %v1075 = vrot.slane %v950, %v1074
        %vm1076 = vcmask 523712
        %v1077 = vsel %vm1076, %v1075, %v1070
        %v1078 = vadd.s32 %v1024, 4294967232
        %v1079 = vlaneseq
        %v1080 = vshrl.u32 %v1079, 7
        %v1081 = vsub.s32 %v1078, %v1080
        %v1082 = vrot.slane %v953, %v1081
        %vm1083 = vcmask 589312
        %v1084 = vsel %vm1083, %v1082, %v1077
        %v1085 = vadd.s32 %v1024, 4294967224
        %v1086 = vlaneseq
        %v1087 = vshrl.u32 %v1086, 7
        %v1088 = vsub.s32 %v1085, %v1087
        %v1089 = vrot.slane %v956, %v1088
        %vm1090 = vcmask 654912
        %v1091 = vsel %vm1090, %v1089, %v1084
        %v1092 = vadd.s32 %v1024, 4294967216
        %v1093 = vlaneseq
        %v1094 = vshrl.u32 %v1093, 7
        %v1095 = vsub.s32 %v1092, %v1094
        %v1096 = vrot.slane %v959, %v1095
        %vm1097 = vcmask 720512
        %v1098 = vsel %vm1097, %v1096, %v1091
        %v1099 = vadd.s32 %v1024, 4294967208
        %v1100 = vlaneseq
        %v1101 = vshrl.u32 %v1100, 7
        %v1102 = vsub.s32 %v1099, %v1101
        %v1103 = vrot.slane %v962, %v1102
        %vm1104 = vcmask 786112
        %v1105 = vsel %vm1104, %v1103, %v1098
        %v1106 = vadd.s32 %v1024, 4294967200
        %v1107 = vlaneseq
        %v1108 = vshrl.u32 %v1107, 7
        %v1109 = vsub.s32 %v1106, %v1108
        %v1110 = vrot.slane %v965, %v1109
        %vm1111 = vcmask 851712
        %v1112 = vsel %vm1111, %v1110, %v1105
        %v1113 = vadd.s32 %v1024, 4294967192
        %v1114 = vlaneseq
        %v1115 = vshrl.u32 %v1114, 7
        %v1116 = vsub.s32 %v1113, %v1115
        %v1117 = vrot.slane %v968, %v1116
        %vm1118 = vcmask 917312
        %v1119 = vsel %vm1118, %v1117, %v1112
        %v1120 = vadd.s32 %v1024, 4294967184
        %v1121 = vlaneseq
        %v1122 = vshrl.u32 %v1121, 7
        %v1123 = vsub.s32 %v1120, %v1122
        %v1124 = vrot.slane %v971, %v1123
        %vm1125 = vcmask 982912
        %v1126 = vsel %vm1125, %v1124, %v1119
        %v1127 = vadd.s32 %v1024, 4294967176
        %v1128 = vlaneseq
        %v1129 = vshrl.u32 %v1128, 7
        %v1130 = vsub.s32 %v1127, %v1129
        %v1131 = vrot.slane %v974, %v1130
        %vm1132 = vcmask 1048512
        %v1133 = vsel %vm1132, %v1131, %v1126
        %vm1134 = vcmask 1042434
        %v1135 = vsel %vm1134, %v1133, %v1133
        %vm1136 = vcmask 1043459
        %v1137 = vsel %vm1136, %v1133, %v1135
        %vm1138 = vcmask 1044484
        %v1139 = vsel %vm1138, %v1133, %v1137
        %vm1140 = vcmask 1045509
        %v1141 = vsel %vm1140, %v1133, %v1139
        %vm1142 = vcmask 1046534
        %v1143 = vsel %vm1142, %v1133, %v1141
        %vm1144 = vcmask 1047559
        %v1145 = vsel %vm1144, %v1133, %v1143
        %v1147 = vadd.f32 %v991, %v1145
        %v1148 = vadd.f32 %v992, %v1145
        %v1149 = vadd.f32 %v993, %v1145
        %v1150 = vadd.f32 %v994, %v1145
        %v1151 = vadd.f32 %v995, %v1145
        %v1152 = vadd.f32 %v996, %v1145
        %v1153 = vadd.f32 %v997, %v1145
        %v1154 = vadd.f32 %v998, %v1145
        %v1155 = vadd.f32 %v999, %v1145
        %v1156 = vadd.f32 %v1000, %v1145
        %v1157 = vadd.f32 %v1001, %v1145
        %v1158 = vadd.f32 %v1002, %v1145
        %v1159 = vadd.f32 %v1003, %v1145
        %v1160 = vadd.f32 %v1004, %v1145
        %v1161 = vadd.f32 %v1005, %v1145
        %v1162 = vadd.f32 %v1006, %v1145
        %v1164 = vlaneseq
        %v1165 = vshrl.u32 %v1164, 7
        %v1166 = vsub.s32 0, %v1165
        %v1167 = vrot.slane %v472, %v1166
        %v1169 = vadd.f32 %v1147, %v1167
        %v1170 = vadd.f32 %v1148, %v1167
        %v1171 = vadd.f32 %v1149, %v1167
        %v1172 = vadd.f32 %v1150, %v1167
        %v1173 = vadd.f32 %v1151, %v1167
        %v1174 = vadd.f32 %v1152, %v1167
        %v1175 = vadd.f32 %v1153, %v1167
        %v1176 = vadd.f32 %v1154, %v1167
        %v1177 = vadd.f32 %v1155, %v1167
        %v1178 = vadd.f32 %v1156, %v1167
        %v1179 = vadd.f32 %v1157, %v1167
        %v1180 = vadd.f32 %v1158, %v1167
        %v1181 = vadd.f32 %v1159, %v1167
        %v1182 = vadd.f32 %v1160, %v1167
        %v1183 = vadd.f32 %v1161, %v1167
        %v1184 = vadd.f32 %v1162, %v1167
        %1185 = vmax.xlane.f32.xlu0 %v1169
        %v1186 = vpop.xlane.xlu0 %1185
        %1187 = vmax.xlane.f32.xlu0 %v1170
        %v1188 = vpop.xlane.xlu0 %1187
        %1189 = vmax.xlane.f32.xlu0 %v1171
        %v1190 = vpop.xlane.xlu0 %1189
        %1191 = vmax.xlane.f32.xlu0 %v1172
        %v1192 = vpop.xlane.xlu0 %1191
        %1193 = vmax.xlane.f32.xlu0 %v1173
        %v1194 = vpop.xlane.xlu0 %1193
        %1195 = vmax.xlane.f32.xlu0 %v1174
        %v1196 = vpop.xlane.xlu0 %1195
        %1197 = vmax.xlane.f32.xlu0 %v1175
        %v1198 = vpop.xlane.xlu0 %1197
        %1199 = vmax.xlane.f32.xlu0 %v1176
        %v1200 = vpop.xlane.xlu0 %1199
        %1201 = vmax.xlane.f32.xlu0 %v1177
        %v1202 = vpop.xlane.xlu0 %1201
        %1203 = vmax.xlane.f32.xlu0 %v1178
        %v1204 = vpop.xlane.xlu0 %1203
        %1205 = vmax.xlane.f32.xlu0 %v1179
        %v1206 = vpop.xlane.xlu0 %1205
        %1207 = vmax.xlane.f32.xlu0 %v1180
        %v1208 = vpop.xlane.xlu0 %1207
        %1209 = vmax.xlane.f32.xlu0 %v1181
        %v1210 = vpop.xlane.xlu0 %1209
        %1211 = vmax.xlane.f32.xlu0 %v1182
        %v1212 = vpop.xlane.xlu0 %1211
        %1213 = vmax.xlane.f32.xlu0 %v1183
        %v1214 = vpop.xlane.xlu0 %1213
        %1215 = vmax.xlane.f32.xlu0 %v1184
        %v1216 = vpop.xlane.xlu0 %1215
        %v1217 = vsub.f32 %v1169, %v1186
        %v1218 = vsub.f32 %v1170, %v1188
        %v1219 = vsub.f32 %v1171, %v1190
        %v1220 = vsub.f32 %v1172, %v1192
        %v1221 = vsub.f32 %v1173, %v1194
        %v1222 = vsub.f32 %v1174, %v1196
        %v1223 = vsub.f32 %v1175, %v1198
        %v1224 = vsub.f32 %v1176, %v1200
        %v1225 = vsub.f32 %v1177, %v1202
        %v1226 = vsub.f32 %v1178, %v1204
        %v1227 = vsub.f32 %v1179, %v1206
        %v1228 = vsub.f32 %v1180, %v1208
        %v1229 = vsub.f32 %v1181, %v1210
        %v1230 = vsub.f32 %v1182, %v1212
        %v1231 = vsub.f32 %v1183, %v1214
        %v1232 = vsub.f32 %v1184, %v1216
        %v1233 = vmul.f32 %v1217, 1.442695
        %v1234 = vpow.pop %v1233
        %v1235 = vmul.f32 %v1218, 1.442695
        %v1236 = vpow.pop %v1235
        %v1237 = vmul.f32 %v1219, 1.442695
        %v1238 = vpow.pop %v1237
        %v1239 = vmul.f32 %v1220, 1.442695
        %v1240 = vpow.pop %v1239
        %v1241 = vmul.f32 %v1221, 1.442695
        %v1242 = vpow.pop %v1241
        %v1243 = vmul.f32 %v1222, 1.442695
        %v1244 = vpow.pop %v1243
        %v1245 = vmul.f32 %v1223, 1.442695
        %v1246 = vpow.pop %v1245
        %v1247 = vmul.f32 %v1224, 1.442695
        %v1248 = vpow.pop %v1247
        %v1249 = vmul.f32 %v1225, 1.442695
        %v1250 = vpow.pop %v1249
        %v1251 = vmul.f32 %v1226, 1.442695
        %v1252 = vpow.pop %v1251
        %v1253 = vmul.f32 %v1227, 1.442695
        %v1254 = vpow.pop %v1253
        %v1255 = vmul.f32 %v1228, 1.442695
        %v1256 = vpow.pop %v1255
        %v1257 = vmul.f32 %v1229, 1.442695
        %v1258 = vpow.pop %v1257
        %v1259 = vmul.f32 %v1230, 1.442695
        %v1260 = vpow.pop %v1259
        %v1261 = vmul.f32 %v1231, 1.442695
        %v1262 = vpow.pop %v1261
        %v1263 = vmul.f32 %v1232, 1.442695
        %v1264 = vpow.pop %v1263
        %1265 = vadd.xlane.f32.xlu0 %v1234
        %v1266 = vpop.xlane.xlu0 %1265
        %1267 = vadd.xlane.f32.xlu0 %v1236
        %v1268 = vpop.xlane.xlu0 %1267
        %1269 = vadd.xlane.f32.xlu0 %v1238
        %v1270 = vpop.xlane.xlu0 %1269
        %1271 = vadd.xlane.f32.xlu0 %v1240
        %v1272 = vpop.xlane.xlu0 %1271
        %1273 = vadd.xlane.f32.xlu0 %v1242
        %v1274 = vpop.xlane.xlu0 %1273
        %1275 = vadd.xlane.f32.xlu0 %v1244
        %v1276 = vpop.xlane.xlu0 %1275
        %1277 = vadd.xlane.f32.xlu0 %v1246
        %v1278 = vpop.xlane.xlu0 %1277
        %1279 = vadd.xlane.f32.xlu0 %v1248
        %v1280 = vpop.xlane.xlu0 %1279
        %1281 = vadd.xlane.f32.xlu0 %v1250
        %v1282 = vpop.xlane.xlu0 %1281
        %1283 = vadd.xlane.f32.xlu0 %v1252
        %v1284 = vpop.xlane.xlu0 %1283
        %1285 = vadd.xlane.f32.xlu0 %v1254
        %v1286 = vpop.xlane.xlu0 %1285
        %1287 = vadd.xlane.f32.xlu0 %v1256
        %v1288 = vpop.xlane.xlu0 %1287
        %1289 = vadd.xlane.f32.xlu0 %v1258
        %v1290 = vpop.xlane.xlu0 %1289
        %1291 = vadd.xlane.f32.xlu0 %v1260
        %v1292 = vpop.xlane.xlu0 %1291
        %1293 = vadd.xlane.f32.xlu0 %v1262
        %v1294 = vpop.xlane.xlu0 %1293
        %1295 = vadd.xlane.f32.xlu0 %v1264
        %v1296 = vpop.xlane.xlu0 %1295
        %v1297 = vrcp.pop %v1266
        %v1298 = vrcp.pop %v1268
        %v1299 = vrcp.pop %v1270
        %v1300 = vrcp.pop %v1272
        %v1301 = vrcp.pop %v1274
        %v1302 = vrcp.pop %v1276
        %v1303 = vrcp.pop %v1278
        %v1304 = vrcp.pop %v1280
        %v1305 = vrcp.pop %v1282
        %v1306 = vrcp.pop %v1284
        %v1307 = vrcp.pop %v1286
        %v1308 = vrcp.pop %v1288
        %v1309 = vrcp.pop %v1290
        %v1310 = vrcp.pop %v1292
        %v1311 = vrcp.pop %v1294
        %v1312 = vrcp.pop %v1296
        %v1313 = vpack.c.bf16 %v1236, %v1234
        %v1314 = vpack.c.bf16 %v1240, %v1238
        %v1315 = vpack.c.bf16 %v1244, %v1242
        %v1316 = vpack.c.bf16 %v1248, %v1246
        %v1317 = vpack.c.bf16 %v1252, %v1250
        %v1318 = vpack.c.bf16 %v1256, %v1254
        %v1319 = vpack.c.bf16 %v1260, %v1258
        %v1320 = vpack.c.bf16 %v1264, %v1262
        %v1337 = vunpack.c.l.b16 %v440
        %v1338 = vunpack.c.l.b16 %v441
        %v1339 = vunpack.c.l.b16 %v442
        %v1340 = vunpack.c.l.b16 %v443
        %v1341 = vunpack.c.l.b16 %v444
        %v1342 = vunpack.c.l.b16 %v445
        %v1343 = vunpack.c.l.b16 %v446
        %v1344 = vunpack.c.l.b16 %v447
        %v1345 = vunpack.c.l.b16 %v448
        %v1346 = vunpack.c.l.b16 %v449
        %v1347 = vunpack.c.l.b16 %v450
        %v1348 = vunpack.c.l.b16 %v451
        %v1349 = vunpack.c.l.b16 %v452
        %v1350 = vunpack.c.l.b16 %v453
        %v1351 = vunpack.c.l.b16 %v454
        %v1352 = vunpack.c.l.b16 %v455
        %v1353 = vpack.c.b16 %v1338, %v1337
        %v1354 = vpack.c.b16 %v1340, %v1339
        %v1355 = vpack.c.b16 %v1342, %v1341
        %v1356 = vpack.c.b16 %v1344, %v1343
        %v1357 = vpack.c.b16 %v1346, %v1345
        %v1358 = vpack.c.b16 %v1348, %v1347
        %v1359 = vpack.c.b16 %v1350, %v1349
        %v1360 = vpack.c.b16 %v1352, %v1351
        %1369 = vmatprep.subr.bf16.mxu0 0
        %1370 = vmatpush1.bf16.msra.mxu0 %v1353
        %1371 = vmatprep.subr.bf16.mxu0 0
        %1372 = vmatpush1.bf16.msra.mxu0 %v1354
        %1373 = vmatprep.subr.bf16.mxu0 0
        %1374 = vmatpush1.bf16.msra.mxu0 %v1355
        %1375 = vmatprep.subr.bf16.mxu0 0
        %1376 = vmatpush1.bf16.msra.mxu0 %v1356
        %1377 = vmatprep.subr.bf16.mxu0 0
        %1378 = vmatpush1.bf16.msra.mxu0 %v1357
        %1379 = vmatprep.subr.bf16.mxu0 0
        %1380 = vmatpush1.bf16.msra.mxu0 %v1358
        %1381 = vmatprep.subr.bf16.mxu0 0
        %1382 = vmatpush1.bf16.msra.mxu0 %v1359
        %1383 = vmatprep.subr.bf16.mxu0 0
        %1384 = vmatpush1.bf16.msra.mxu0 %v1360
        %1385 = vmatprep.subr.bf16.mxu0 0
        %1386 = vmatpush1.bf16.msra.mxu0 0
        %1387 = vmatprep.subr.bf16.mxu0 0
        %1388 = vmatpush1.bf16.msra.mxu0 0
        %1389 = vmatprep.subr.bf16.mxu0 0
        %1390 = vmatpush1.bf16.msra.mxu0 0
        %1391 = vmatprep.subr.bf16.mxu0 0
        %1392 = vmatpush1.bf16.msra.mxu0 0
        %1393 = vmatprep.subr.bf16.mxu0 0
        %1394 = vmatpush1.bf16.msra.mxu0 0
        %1395 = vmatprep.subr.bf16.mxu0 0
        %1396 = vmatpush1.bf16.msra.mxu0 0
        %1397 = vmatprep.subr.bf16.mxu0 0
        %1398 = vmatpush1.bf16.msra.mxu0 0
        %1399 = vmatprep.subr.bf16.mxu0 0
        %1400 = vmatpush1.bf16.msra.mxu0 0
        %1401 = vmatprep.mubr.bf16.mxu0 0
        %1402 = vmatmul.mubr.bf16.gmra.mrb[0].mxu0 %v1313
        %v1403 = vpop.f32.mrb[0].mxu0
        %v1404 = vadd.f32 0.0, %v1403
        %v1405 = vpop.f32.mrb[0].mxu0
        %v1406 = vpop.f32.mrb[0].mxu0
        %v1407 = vadd.f32 0.0, %v1406
        %v1408 = vpop.f32.mrb[0].mxu0
        %1409 = vmatprep.mubr.bf16.mxu0 0
        %1410 = vmatmul.mubr.bf16.gmra.mrb[0].mxu0 %v1314
        %v1411 = vpop.f32.mrb[0].mxu0
        %v1412 = vadd.f32 0.0, %v1411
        %v1413 = vpop.f32.mrb[0].mxu0
        %v1414 = vpop.f32.mrb[0].mxu0
        %v1415 = vadd.f32 0.0, %v1414
        %v1416 = vpop.f32.mrb[0].mxu0
        %1417 = vmatprep.mubr.bf16.mxu0 0
        %1418 = vmatmul.mubr.bf16.gmra.mrb[0].mxu0 %v1315
        %v1419 = vpop.f32.mrb[0].mxu0
        %v1420 = vadd.f32 0.0, %v1419
        %v1421 = vpop.f32.mrb[0].mxu0
        %v1422 = vpop.f32.mrb[0].mxu0
        %v1423 = vadd.f32 0.0, %v1422
        %v1424 = vpop.f32.mrb[0].mxu0
        %1425 = vmatprep.mubr.bf16.mxu0 0
        %1426 = vmatmul.mubr.bf16.gmra.mrb[0].mxu0 %v1316
        %v1427 = vpop.f32.mrb[0].mxu0
        %v1428 = vadd.f32 0.0, %v1427
        %v1429 = vpop.f32.mrb[0].mxu0
        %v1430 = vpop.f32.mrb[0].mxu0
        %v1431 = vadd.f32 0.0, %v1430
        %v1432 = vpop.f32.mrb[0].mxu0
        %1433 = vmatprep.mubr.bf16.mxu0 0
        %1434 = vmatmul.mubr.bf16.gmra.mrb[0].mxu0 %v1317
        %v1435 = vpop.f32.mrb[0].mxu0
        %v1436 = vadd.f32 0.0, %v1435
        %v1437 = vpop.f32.mrb[0].mxu0
        %v1438 = vpop.f32.mrb[0].mxu0
        %v1439 = vadd.f32 0.0, %v1438
        %v1440 = vpop.f32.mrb[0].mxu0
        %1441 = vmatprep.mubr.bf16.mxu0 0
        %1442 = vmatmul.mubr.bf16.gmra.mrb[0].mxu0 %v1318
        %v1443 = vpop.f32.mrb[0].mxu0
        %v1444 = vadd.f32 0.0, %v1443
        %v1445 = vpop.f32.mrb[0].mxu0
        %v1446 = vpop.f32.mrb[0].mxu0
        %v1447 = vadd.f32 0.0, %v1446
        %v1448 = vpop.f32.mrb[0].mxu0
        %1449 = vmatprep.mubr.bf16.mxu0 0
        %1450 = vmatmul.mubr.bf16.gmra.mrb[0].mxu0 %v1319
        %v1451 = vpop.f32.mrb[0].mxu0
        %v1452 = vadd.f32 0.0, %v1451
        %v1453 = vpop.f32.mrb[0].mxu0
        %v1454 = vpop.f32.mrb[0].mxu0
        %v1455 = vadd.f32 0.0, %v1454
        %v1456 = vpop.f32.mrb[0].mxu0
        %1457 = vmatprep.mubr.bf16.mxu0 0
        %1458 = vmatmul.mubr.bf16.gmra.mrb[0].mxu0 %v1320
        %v1459 = vpop.f32.mrb[0].mxu0
        %v1460 = vadd.f32 0.0, %v1459
        %v1461 = vpop.f32.mrb[0].mxu0
        %v1462 = vpop.f32.mrb[0].mxu0
        %v1463 = vadd.f32 0.0, %v1462
        %v1464 = vpop.f32.mrb[0].mxu0
        %1465 = vdwg.mxu0
        %v1466 = vmul.f32 %v1404, %v1297
        %v1467 = vmul.f32 %v1407, %v1298
        %v1468 = vmul.f32 %v1412, %v1299
        %v1469 = vmul.f32 %v1415, %v1300
        %v1470 = vmul.f32 %v1420, %v1301
        %v1471 = vmul.f32 %v1423, %v1302
        %v1472 = vmul.f32 %v1428, %v1303
        %v1473 = vmul.f32 %v1431, %v1304
        %v1474 = vmul.f32 %v1436, %v1305
        %v1475 = vmul.f32 %v1439, %v1306
        %v1476 = vmul.f32 %v1444, %v1307
        %v1477 = vmul.f32 %v1447, %v1308
        %v1478 = vmul.f32 %v1452, %v1309
        %v1479 = vmul.f32 %v1455, %v1310
        %v1480 = vmul.f32 %v1460, %v1311
        %v1481 = vmul.f32 %v1463, %v1312
        %v1482 = vpack.c.bf16 %v1467, %v1466
        %v1483 = vpack.c.bf16 %v1469, %v1468
        %v1484 = vpack.c.bf16 %v1471, %v1470
        %v1485 = vpack.c.bf16 %v1473, %v1472
        %v1486 = vpack.c.bf16 %v1475, %v1474
        %v1487 = vpack.c.bf16 %v1477, %v1476
        %v1488 = vpack.c.bf16 %v1479, %v1478
        %v1489 = vpack.c.bf16 %v1481, %v1480
        %1498 = vrot.lane.b32.xlu0 %v1482, 32
        %v1499 = vpop.permute.xlu0 %1498
        %1500 = vrot.lane.b32.xlu0 %v1483, 32
        %v1501 = vpop.permute.xlu0 %1500
        %1502 = vrot.lane.b32.xlu0 %v1484, 32
        %v1503 = vpop.permute.xlu0 %1502
        %1504 = vrot.lane.b32.xlu0 %v1485, 32
        %v1505 = vpop.permute.xlu0 %1504
        %1506 = vrot.lane.b32.xlu0 %v1486, 32
        %v1507 = vpop.permute.xlu0 %1506
        %1508 = vrot.lane.b32.xlu0 %v1487, 32
        %v1509 = vpop.permute.xlu0 %1508
        %1510 = vrot.lane.b32.xlu0 %v1488, 32
        %v1511 = vpop.permute.xlu0 %1510
        %1512 = vrot.lane.b32.xlu0 %v1489, 32
        %v1513 = vpop.permute.xlu0 %1512
        %v1515 = vsel %vm585, %v577, %v1499
        %v1518 = vsel %vm585, %v578, %v1501
        %v1521 = vsel %vm585, %v579, %v1503
        %v1524 = vsel %vm585, %v580, %v1505
        %v1527 = vsel %vm585, %v581, %v1507
        %v1530 = vsel %vm585, %v582, %v1509
        %v1533 = vsel %vm585, %v583, %v1511
        %v1536 = vsel %vm585, %v584, %v1513
        %1538 = vmatprep.subr.bf16.mxu0 0
        %1539 = vmatpush1.bf16.msra.mxu0 %v1515
        %1540 = vmatprep.subr.bf16.mxu0 0
        %1541 = vmatpush1.bf16.msra.mxu0 %v1518
        %1542 = vmatprep.subr.bf16.mxu0 0
        %1543 = vmatpush1.bf16.msra.mxu0 %v1521
        %1544 = vmatprep.subr.bf16.mxu0 0
        %1545 = vmatpush1.bf16.msra.mxu0 %v1524
        %1546 = vmatprep.subr.bf16.mxu0 0
        %1547 = vmatpush1.bf16.msra.mxu0 %v1527
        %1548 = vmatprep.subr.bf16.mxu0 0
        %1549 = vmatpush1.bf16.msra.mxu0 %v1530
        %1550 = vmatprep.subr.bf16.mxu0 0
        %1551 = vmatpush1.bf16.msra.mxu0 %v1533
        %1552 = vmatprep.subr.bf16.mxu0 0
        %1553 = vmatpush1.bf16.msra.mxu0 %v1536
        %1554 = vmatprep.subr.bf16.mxu0 0
        %1555 = vmatpush1.bf16.msra.mxu0 0
        %1556 = vmatprep.subr.bf16.mxu0 0
        %1557 = vmatpush1.bf16.msra.mxu0 0
        %1558 = vmatprep.subr.bf16.mxu0 0
        %1559 = vmatpush1.bf16.msra.mxu0 0
        %1560 = vmatprep.subr.bf16.mxu0 0
        %1561 = vmatpush1.bf16.msra.mxu0 0
        %1562 = vmatprep.subr.bf16.mxu0 0
        %1563 = vmatpush1.bf16.msra.mxu0 0
        %1564 = vmatprep.subr.bf16.mxu0 0
        %1565 = vmatpush1.bf16.msra.mxu0 0
        %1566 = vmatprep.subr.bf16.mxu0 0
        %1567 = vmatpush1.bf16.msra.mxu0 0
        %1568 = vmatprep.subr.bf16.mxu0 0
        %1569 = vmatpush1.bf16.msra.mxu0 0
        %1570 = vmatprep.mubr.bf16.mxu0 0
        %1571 = vmatmul.mubr.bf16.gmra.mrb[0].mxu0 %v897
        %v1572 = vpop.f32.mrb[0].mxu0
        %v1573 = vadd.f32 0.0, %v1572
        %v1574 = vpop.f32.mrb[0].mxu0
        %v1575 = vpop.f32.mrb[0].mxu0
        %v1576 = vadd.f32 0.0, %v1575
        %v1577 = vpop.f32.mrb[0].mxu0
        %1578 = vmatprep.mubr.bf16.mxu0 0
        %1579 = vmatmul.mubr.bf16.gmra.mrb[0].mxu0 %v898
        %v1580 = vpop.f32.mrb[0].mxu0
        %v1581 = vadd.f32 0.0, %v1580
        %v1582 = vpop.f32.mrb[0].mxu0
        %v1583 = vpop.f32.mrb[0].mxu0
        %v1584 = vadd.f32 0.0, %v1583
        %v1585 = vpop.f32.mrb[0].mxu0
        %1586 = vmatprep.mubr.bf16.mxu0 0
        %1587 = vmatmul.mubr.bf16.gmra.mrb[0].mxu0 %v899
        %v1588 = vpop.f32.mrb[0].mxu0
        %v1589 = vadd.f32 0.0, %v1588
        %v1590 = vpop.f32.mrb[0].mxu0
        %v1591 = vpop.f32.mrb[0].mxu0
        %v1592 = vadd.f32 0.0, %v1591
        %v1593 = vpop.f32.mrb[0].mxu0
        %1594 = vmatprep.mubr.bf16.mxu0 0
        %1595 = vmatmul.mubr.bf16.gmra.mrb[0].mxu0 %v900
        %v1596 = vpop.f32.mrb[0].mxu0
        %v1597 = vadd.f32 0.0, %v1596
        %v1598 = vpop.f32.mrb[0].mxu0
        %v1599 = vpop.f32.mrb[0].mxu0
        %v1600 = vadd.f32 0.0, %v1599
        %v1601 = vpop.f32.mrb[0].mxu0
        %1602 = vmatprep.mubr.bf16.mxu0 0
        %1603 = vmatmul.mubr.bf16.gmra.mrb[0].mxu0 %v901
        %v1604 = vpop.f32.mrb[0].mxu0
        %v1605 = vadd.f32 0.0, %v1604
        %v1606 = vpop.f32.mrb[0].mxu0
        %v1607 = vpop.f32.mrb[0].mxu0
        %v1608 = vadd.f32 0.0, %v1607
        %v1609 = vpop.f32.mrb[0].mxu0
        %1610 = vmatprep.mubr.bf16.mxu0 0
        %1611 = vmatmul.mubr.bf16.gmra.mrb[0].mxu0 %v902
        %v1612 = vpop.f32.mrb[0].mxu0
        %v1613 = vadd.f32 0.0, %v1612
        %v1614 = vpop.f32.mrb[0].mxu0
        %v1615 = vpop.f32.mrb[0].mxu0
        %v1616 = vadd.f32 0.0, %v1615
        %v1617 = vpop.f32.mrb[0].mxu0
        %1618 = vmatprep.mubr.bf16.mxu0 0
        %1619 = vmatmul.mubr.bf16.gmra.mrb[0].mxu0 %v903
        %v1620 = vpop.f32.mrb[0].mxu0
        %v1621 = vadd.f32 0.0, %v1620
        %v1622 = vpop.f32.mrb[0].mxu0
        %v1623 = vpop.f32.mrb[0].mxu0
        %v1624 = vadd.f32 0.0, %v1623
        %v1625 = vpop.f32.mrb[0].mxu0
        %1626 = vmatprep.mubr.bf16.mxu0 0
        %1627 = vmatmul.mubr.bf16.gmra.mrb[0].mxu0 %v904
        %v1628 = vpop.f32.mrb[0].mxu0
        %v1629 = vadd.f32 0.0, %v1628
        %v1630 = vpop.f32.mrb[0].mxu0
        %v1631 = vpop.f32.mrb[0].mxu0
        %v1632 = vadd.f32 0.0, %v1631
        %v1633 = vpop.f32.mrb[0].mxu0
        %1634 = vdwg.mxu0
        %vm1635 = vcmask 257024
        %1636 = vst.msk [vmem:[%s438] sm:$0xf] %vm1635, %v440
        %1637 = vst.msk [vmem:[%s438 + $0x4] sm:$0xf] %vm1635, %v441
        %1638 = vst.msk [vmem:[%s438 + $0x8] sm:$0xf] %vm1635, %v442
        %1639 = vst.msk [vmem:[%s438 + $0xc] sm:$0xf] %vm1635, %v443
        %1640 = vst.msk [vmem:[%s438 + $0x10] sm:$0xf] %vm1635, %v444
        %1641 = vst.msk [vmem:[%s438 + $0x14] sm:$0xf] %vm1635, %v445
        %1642 = vst.msk [vmem:[%s438 + $0x18] sm:$0xf] %vm1635, %v446
        %1643 = vst.msk [vmem:[%s438 + $0x1c] sm:$0xf] %vm1635, %v447
        %1644 = vst.msk [vmem:[%s438 + $0x20] sm:$0xf] %vm1635, %v448
        %1645 = vst.msk [vmem:[%s438 + $0x24] sm:$0xf] %vm1635, %v449
        %1646 = vst.msk [vmem:[%s438 + $0x28] sm:$0xf] %vm1635, %v450
        %1647 = vst.msk [vmem:[%s438 + $0x2c] sm:$0xf] %vm1635, %v451
        %1648 = vst.msk [vmem:[%s438 + $0x30] sm:$0xf] %vm1635, %v452
        %1649 = vst.msk [vmem:[%s438 + $0x34] sm:$0xf] %vm1635, %v453
        %1650 = vst.msk [vmem:[%s438 + $0x38] sm:$0xf] %vm1635, %v454
        %1651 = vst.msk [vmem:[%s438 + $0x3c] sm:$0xf] %vm1635, %v455
        %v1652 = vpack.c.bf16 %v1576, %v1573
        %v1653 = vpack.c.bf16 %v1584, %v1581
        %v1654 = vpack.c.bf16 %v1592, %v1589
        %v1655 = vpack.c.bf16 %v1600, %v1597
        %v1656 = vpack.c.bf16 %v1608, %v1605
        %v1657 = vpack.c.bf16 %v1616, %v1613
        %v1658 = vpack.c.bf16 %v1624, %v1621
        %v1659 = vpack.c.bf16 %v1632, %v1629
        %v1668 = vunpack.c.l.b16 %v1652
        %v1669 = vunpack.c.h.b16 %v1652
        %v1670 = vunpack.c.l.b16 %v1653
        %v1671 = vunpack.c.h.b16 %v1653
        %v1672 = vunpack.c.l.b16 %v1654
        %v1673 = vunpack.c.h.b16 %v1654
        %v1674 = vunpack.c.l.b16 %v1655
        %v1675 = vunpack.c.h.b16 %v1655
        %v1676 = vunpack.c.l.b16 %v1656
        %v1677 = vunpack.c.h.b16 %v1656
        %v1678 = vunpack.c.l.b16 %v1657
        %v1679 = vunpack.c.h.b16 %v1657
        %v1680 = vunpack.c.l.b16 %v1658
        %v1681 = vunpack.c.h.b16 %v1658
        %v1682 = vunpack.c.l.b16 %v1659
        %v1683 = vunpack.c.h.b16 %v1659
        %v1684 = vpack.c.b16 %v1668, %v1668
        %v1685 = vpack.c.b16 %v1669, %v1669
        %v1686 = vpack.c.b16 %v1670, %v1670
        %v1687 = vpack.c.b16 %v1671, %v1671
        %v1688 = vpack.c.b16 %v1672, %v1672
        %v1689 = vpack.c.b16 %v1673, %v1673
        %v1690 = vpack.c.b16 %v1674, %v1674
        %v1691 = vpack.c.b16 %v1675, %v1675
        %v1692 = vpack.c.b16 %v1676, %v1676
        %v1693 = vpack.c.b16 %v1677, %v1677
        %v1694 = vpack.c.b16 %v1678, %v1678
        %v1695 = vpack.c.b16 %v1679, %v1679
        %v1696 = vpack.c.b16 %v1680, %v1680
        %v1697 = vpack.c.b16 %v1681, %v1681
        %v1698 = vpack.c.b16 %v1682, %v1682
        %v1699 = vpack.c.b16 %v1683, %v1683
        %1700 = vrot.lane.b32.xlu0 %v1684, 32
        %v1701 = vpop.permute.xlu0 %1700
        %1702 = vrot.lane.b32.xlu0 %v1685, 32
        %v1703 = vpop.permute.xlu0 %1702
        %1704 = vrot.lane.b32.xlu0 %v1686, 32
        %v1705 = vpop.permute.xlu0 %1704
        %1706 = vrot.lane.b32.xlu0 %v1687, 32
        %v1707 = vpop.permute.xlu0 %1706
        %1708 = vrot.lane.b32.xlu0 %v1688, 32
        %v1709 = vpop.permute.xlu0 %1708
        %1710 = vrot.lane.b32.xlu0 %v1689, 32
        %v1711 = vpop.permute.xlu0 %1710
        %1712 = vrot.lane.b32.xlu0 %v1690, 32
        %v1713 = vpop.permute.xlu0 %1712
        %1714 = vrot.lane.b32.xlu0 %v1691, 32
        %v1715 = vpop.permute.xlu0 %1714
        %1716 = vrot.lane.b32.xlu0 %v1692, 32
        %v1717 = vpop.permute.xlu0 %1716
        %1718 = vrot.lane.b32.xlu0 %v1693, 32
        %v1719 = vpop.permute.xlu0 %1718
        %1720 = vrot.lane.b32.xlu0 %v1694, 32
        %v1721 = vpop.permute.xlu0 %1720
        %1722 = vrot.lane.b32.xlu0 %v1695, 32
        %v1723 = vpop.permute.xlu0 %1722
        %1724 = vrot.lane.b32.xlu0 %v1696, 32
        %v1725 = vpop.permute.xlu0 %1724
        %1726 = vrot.lane.b32.xlu0 %v1697, 32
        %v1727 = vpop.permute.xlu0 %1726
        %1728 = vrot.lane.b32.xlu0 %v1698, 32
        %v1729 = vpop.permute.xlu0 %1728
        %1730 = vrot.lane.b32.xlu0 %v1699, 32
        %v1731 = vpop.permute.xlu0 %1730
        %vm1748 = vcmask 519424
        %1749 = vst.msk [vmem:[%s438] sm:$0xf] %vm1748, %v1701
        %1750 = vst.msk [vmem:[%s438 + $0x4] sm:$0xf] %vm1748, %v1703
        %1751 = vst.msk [vmem:[%s438 + $0x8] sm:$0xf] %vm1748, %v1705
        %1752 = vst.msk [vmem:[%s438 + $0xc] sm:$0xf] %vm1748, %v1707
        %1753 = vst.msk [vmem:[%s438 + $0x10] sm:$0xf] %vm1748, %v1709
        %1754 = vst.msk [vmem:[%s438 + $0x14] sm:$0xf] %vm1748, %v1711
        %1755 = vst.msk [vmem:[%s438 + $0x18] sm:$0xf] %vm1748, %v1713
        %1756 = vst.msk [vmem:[%s438 + $0x1c] sm:$0xf] %vm1748, %v1715
        %1757 = vst.msk [vmem:[%s438 + $0x20] sm:$0xf] %vm1748, %v1717
        %1758 = vst.msk [vmem:[%s438 + $0x24] sm:$0xf] %vm1748, %v1719
        %1759 = vst.msk [vmem:[%s438 + $0x28] sm:$0xf] %vm1748, %v1721
        %1760 = vst.msk [vmem:[%s438 + $0x2c] sm:$0xf] %vm1748, %v1723
        %1761 = vst.msk [vmem:[%s438 + $0x30] sm:$0xf] %vm1748, %v1725
        %1762 = vst.msk [vmem:[%s438 + $0x34] sm:$0xf] %vm1748, %v1727
        %1763 = vst.msk [vmem:[%s438 + $0x38] sm:$0xf] %vm1748, %v1729
        %1764 = vst.msk [vmem:[%s438 + $0x3c] sm:$0xf] %vm1748, %v1731
        %v1765 = vmul.f32 %v477, %v1573
        %v1766 = vmul.f32 %v478, %v1576
        %v1767 = vmul.f32 %v479, %v1581
        %v1768 = vmul.f32 %v480, %v1584
        %v1769 = vmul.f32 %v481, %v1589
        %v1770 = vmul.f32 %v482, %v1592
        %v1771 = vmul.f32 %v483, %v1597
        %v1772 = vmul.f32 %v484, %v1600
        %v1773 = vmul.f32 %v485, %v1605
        %v1774 = vmul.f32 %v486, %v1608
        %v1775 = vmul.f32 %v487, %v1613
        %v1776 = vmul.f32 %v488, %v1616
        %v1777 = vmul.f32 %v489, %v1621
        %v1778 = vmul.f32 %v490, %v1624
        %v1779 = vmul.f32 %v491, %v1629
        %v1780 = vmul.f32 %v492, %v1632
        %v1781 = vpack.c.bf16 %v1766, %v1765
        %v1782 = vpack.c.bf16 %v1768, %v1767
        %v1783 = vpack.c.bf16 %v1770, %v1769
        %v1784 = vpack.c.bf16 %v1772, %v1771
        %v1785 = vpack.c.bf16 %v1774, %v1773
        %v1786 = vpack.c.bf16 %v1776, %v1775
        %v1787 = vpack.c.bf16 %v1778, %v1777
        %v1788 = vpack.c.bf16 %v1780, %v1779
        %v1797 = vunpack.c.l.b16 %v1781
        %v1798 = vunpack.c.h.b16 %v1781
        %v1799 = vunpack.c.l.b16 %v1782
        %v1800 = vunpack.c.h.b16 %v1782
        %v1801 = vunpack.c.l.b16 %v1783
        %v1802 = vunpack.c.h.b16 %v1783
        %v1803 = vunpack.c.l.b16 %v1784
        %v1804 = vunpack.c.h.b16 %v1784
        %v1805 = vunpack.c.l.b16 %v1785
        %v1806 = vunpack.c.h.b16 %v1785
        %v1807 = vunpack.c.l.b16 %v1786
        %v1808 = vunpack.c.h.b16 %v1786
        %v1809 = vunpack.c.l.b16 %v1787
        %v1810 = vunpack.c.h.b16 %v1787
        %v1811 = vunpack.c.l.b16 %v1788
        %v1812 = vunpack.c.h.b16 %v1788
        %v1813 = vpack.c.b16 %v1797, %v1797
        %v1814 = vpack.c.b16 %v1798, %v1798
        %v1815 = vpack.c.b16 %v1799, %v1799
        %v1816 = vpack.c.b16 %v1800, %v1800
        %v1817 = vpack.c.b16 %v1801, %v1801
        %v1818 = vpack.c.b16 %v1802, %v1802
        %v1819 = vpack.c.b16 %v1803, %v1803
        %v1820 = vpack.c.b16 %v1804, %v1804
        %v1821 = vpack.c.b16 %v1805, %v1805
        %v1822 = vpack.c.b16 %v1806, %v1806
        %v1823 = vpack.c.b16 %v1807, %v1807
        %v1824 = vpack.c.b16 %v1808, %v1808
        %v1825 = vpack.c.b16 %v1809, %v1809
        %v1826 = vpack.c.b16 %v1810, %v1810
        %v1827 = vpack.c.b16 %v1811, %v1811
        %v1828 = vpack.c.b16 %v1812, %v1812
        %1829 = vrot.lane.b32.xlu0 %v1813, 64
        %v1830 = vpop.permute.xlu0 %1829
        %1831 = vrot.lane.b32.xlu0 %v1814, 64
        %v1832 = vpop.permute.xlu0 %1831
        %1833 = vrot.lane.b32.xlu0 %v1815, 64
        %v1834 = vpop.permute.xlu0 %1833
        %1835 = vrot.lane.b32.xlu0 %v1816, 64
        %v1836 = vpop.permute.xlu0 %1835
        %1837 = vrot.lane.b32.xlu0 %v1817, 64
        %v1838 = vpop.permute.xlu0 %1837
        %1839 = vrot.lane.b32.xlu0 %v1818, 64
        %v1840 = vpop.permute.xlu0 %1839
        %1841 = vrot.lane.b32.xlu0 %v1819, 64
        %v1842 = vpop.permute.xlu0 %1841
        %1843 = vrot.lane.b32.xlu0 %v1820, 64
        %v1844 = vpop.permute.xlu0 %1843
        %1845 = vrot.lane.b32.xlu0 %v1821, 64
        %v1846 = vpop.permute.xlu0 %1845
        %1847 = vrot.lane.b32.xlu0 %v1822, 64
        %v1848 = vpop.permute.xlu0 %1847
        %1849 = vrot.lane.b32.xlu0 %v1823, 64
        %v1850 = vpop.permute.xlu0 %1849
        %1851 = vrot.lane.b32.xlu0 %v1824, 64
        %v1852 = vpop.permute.xlu0 %1851
        %1853 = vrot.lane.b32.xlu0 %v1825, 64
        %v1854 = vpop.permute.xlu0 %1853
        %1855 = vrot.lane.b32.xlu0 %v1826, 64
        %v1856 = vpop.permute.xlu0 %1855
        %1857 = vrot.lane.b32.xlu0 %v1827, 64
        %v1858 = vpop.permute.xlu0 %1857
        %1859 = vrot.lane.b32.xlu0 %v1828, 64
        %v1860 = vpop.permute.xlu0 %1859
        %vm1877 = vcmask 781824
        %1878 = vst.msk [vmem:[%s438] sm:$0xf] %vm1877, %v1830
        %1879 = vst.msk [vmem:[%s438 + $0x4] sm:$0xf] %vm1877, %v1832
        %1880 = vst.msk [vmem:[%s438 + $0x8] sm:$0xf] %vm1877, %v1834
        %1881 = vst.msk [vmem:[%s438 + $0xc] sm:$0xf] %vm1877, %v1836
        %1882 = vst.msk [vmem:[%s438 + $0x10] sm:$0xf] %vm1877, %v1838
        %1883 = vst.msk [vmem:[%s438 + $0x14] sm:$0xf] %vm1877, %v1840
        %1884 = vst.msk [vmem:[%s438 + $0x18] sm:$0xf] %vm1877, %v1842
        %1885 = vst.msk [vmem:[%s438 + $0x1c] sm:$0xf] %vm1877, %v1844
        %1886 = vst.msk [vmem:[%s438 + $0x20] sm:$0xf] %vm1877, %v1846
        %1887 = vst.msk [vmem:[%s438 + $0x24] sm:$0xf] %vm1877, %v1848
        %1888 = vst.msk [vmem:[%s438 + $0x28] sm:$0xf] %vm1877, %v1850
        %1889 = vst.msk [vmem:[%s438 + $0x2c] sm:$0xf] %vm1877, %v1852
        %1890 = vst.msk [vmem:[%s438 + $0x30] sm:$0xf] %vm1877, %v1854
        %1891 = vst.msk [vmem:[%s438 + $0x34] sm:$0xf] %vm1877, %v1856
        %1892 = vst.msk [vmem:[%s438 + $0x38] sm:$0xf] %vm1877, %v1858
        %1893 = vst.msk [vmem:[%s438 + $0x3c] sm:$0xf] %vm1877, %v1860
        %1910 = vrot.lane.b32.xlu0 %v1573, 96
        %v1911 = vpop.permute.xlu0 %1910
        %1912 = vrot.lane.b32.xlu0 %v1576, 96
        %v1913 = vpop.permute.xlu0 %1912
        %1914 = vrot.lane.b32.xlu0 %v1581, 96
        %v1915 = vpop.permute.xlu0 %1914
        %1916 = vrot.lane.b32.xlu0 %v1584, 96
        %v1917 = vpop.permute.xlu0 %1916
        %1918 = vrot.lane.b32.xlu0 %v1589, 96
        %v1919 = vpop.permute.xlu0 %1918
        %1920 = vrot.lane.b32.xlu0 %v1592, 96
        %v1921 = vpop.permute.xlu0 %1920
        %1922 = vrot.lane.b32.xlu0 %v1597, 96
        %v1923 = vpop.permute.xlu0 %1922
        %1924 = vrot.lane.b32.xlu0 %v1600, 96
        %v1925 = vpop.permute.xlu0 %1924
        %1926 = vrot.lane.b32.xlu0 %v1605, 96
        %v1927 = vpop.permute.xlu0 %1926
        %1928 = vrot.lane.b32.xlu0 %v1608, 96
        %v1929 = vpop.permute.xlu0 %1928
        %1930 = vrot.lane.b32.xlu0 %v1613, 96
        %v1931 = vpop.permute.xlu0 %1930
        %1932 = vrot.lane.b32.xlu0 %v1616, 96
        %v1933 = vpop.permute.xlu0 %1932
        %1934 = vrot.lane.b32.xlu0 %v1621, 96
        %v1935 = vpop.permute.xlu0 %1934
        %1936 = vrot.lane.b32.xlu0 %v1624, 96
        %v1937 = vpop.permute.xlu0 %1936
        %1938 = vrot.lane.b32.xlu0 %v1629, 96
        %v1939 = vpop.permute.xlu0 %1938
        %1940 = vrot.lane.b32.xlu0 %v1632, 96
        %v1941 = vpop.permute.xlu0 %1940
        %v1958 = vmul.f32 %v477, %v1911
        %v1959 = vmul.f32 %v478, %v1913
        %v1960 = vmul.f32 %v479, %v1915
        %v1961 = vmul.f32 %v480, %v1917
        %v1962 = vmul.f32 %v481, %v1919
        %v1963 = vmul.f32 %v482, %v1921
        %v1964 = vmul.f32 %v483, %v1923
        %v1965 = vmul.f32 %v484, %v1925
        %v1966 = vmul.f32 %v485, %v1927
        %v1967 = vmul.f32 %v486, %v1929
        %v1968 = vmul.f32 %v487, %v1931
        %v1969 = vmul.f32 %v488, %v1933
        %v1970 = vmul.f32 %v489, %v1935
        %v1971 = vmul.f32 %v490, %v1937
        %v1972 = vmul.f32 %v491, %v1939
        %v1973 = vmul.f32 %v492, %v1941
        %v1974 = vpack.c.bf16 %v1959, %v1958
        %v1975 = vpack.c.bf16 %v1961, %v1960
        %v1976 = vpack.c.bf16 %v1963, %v1962
        %v1977 = vpack.c.bf16 %v1965, %v1964
        %v1978 = vpack.c.bf16 %v1967, %v1966
        %v1979 = vpack.c.bf16 %v1969, %v1968
        %v1980 = vpack.c.bf16 %v1971, %v1970
        %v1981 = vpack.c.bf16 %v1973, %v1972
        %v1990 = vunpack.c.l.b16 %v1974
        %v1991 = vunpack.c.h.b16 %v1974
        %v1992 = vunpack.c.l.b16 %v1975
        %v1993 = vunpack.c.h.b16 %v1975
        %v1994 = vunpack.c.l.b16 %v1976
        %v1995 = vunpack.c.h.b16 %v1976
        %v1996 = vunpack.c.l.b16 %v1977
        %v1997 = vunpack.c.h.b16 %v1977
        %v1998 = vunpack.c.l.b16 %v1978
        %v1999 = vunpack.c.h.b16 %v1978
        %v2000 = vunpack.c.l.b16 %v1979
        %v2001 = vunpack.c.h.b16 %v1979
        %v2002 = vunpack.c.l.b16 %v1980
        %v2003 = vunpack.c.h.b16 %v1980
        %v2004 = vunpack.c.l.b16 %v1981
        %v2005 = vunpack.c.h.b16 %v1981
        %v2006 = vpack.c.b16 %v1990, %v1990
        %v2007 = vpack.c.b16 %v1991, %v1991
        %v2008 = vpack.c.b16 %v1992, %v1992
        %v2009 = vpack.c.b16 %v1993, %v1993
        %v2010 = vpack.c.b16 %v1994, %v1994
        %v2011 = vpack.c.b16 %v1995, %v1995
        %v2012 = vpack.c.b16 %v1996, %v1996
        %v2013 = vpack.c.b16 %v1997, %v1997
        %v2014 = vpack.c.b16 %v1998, %v1998
        %v2015 = vpack.c.b16 %v1999, %v1999
        %v2016 = vpack.c.b16 %v2000, %v2000
        %v2017 = vpack.c.b16 %v2001, %v2001
        %v2018 = vpack.c.b16 %v2002, %v2002
        %v2019 = vpack.c.b16 %v2003, %v2003
        %v2020 = vpack.c.b16 %v2004, %v2004
        %v2021 = vpack.c.b16 %v2005, %v2005
        %2022 = vrot.lane.b32.xlu0 %v2006, 96
        %v2023 = vpop.permute.xlu0 %2022
        %2024 = vrot.lane.b32.xlu0 %v2007, 96
        %v2025 = vpop.permute.xlu0 %2024
        %2026 = vrot.lane.b32.xlu0 %v2008, 96
        %v2027 = vpop.permute.xlu0 %2026
        %2028 = vrot.lane.b32.xlu0 %v2009, 96
        %v2029 = vpop.permute.xlu0 %2028
        %2030 = vrot.lane.b32.xlu0 %v2010, 96
        %v2031 = vpop.permute.xlu0 %2030
        %2032 = vrot.lane.b32.xlu0 %v2011, 96
        %v2033 = vpop.permute.xlu0 %2032
        %2034 = vrot.lane.b32.xlu0 %v2012, 96
        %v2035 = vpop.permute.xlu0 %2034
        %2036 = vrot.lane.b32.xlu0 %v2013, 96
        %v2037 = vpop.permute.xlu0 %2036
        %2038 = vrot.lane.b32.xlu0 %v2014, 96
        %v2039 = vpop.permute.xlu0 %2038
        %2040 = vrot.lane.b32.xlu0 %v2015, 96
        %v2041 = vpop.permute.xlu0 %2040
        %2042 = vrot.lane.b32.xlu0 %v2016, 96
        %v2043 = vpop.permute.xlu0 %2042
        %2044 = vrot.lane.b32.xlu0 %v2017, 96
        %v2045 = vpop.permute.xlu0 %2044
        %2046 = vrot.lane.b32.xlu0 %v2018, 96
        %v2047 = vpop.permute.xlu0 %2046
        %2048 = vrot.lane.b32.xlu0 %v2019, 96
        %v2049 = vpop.permute.xlu0 %2048
        %2050 = vrot.lane.b32.xlu0 %v2020, 96
        %v2051 = vpop.permute.xlu0 %2050
        %2052 = vrot.lane.b32.xlu0 %v2021, 96
        %v2053 = vpop.permute.xlu0 %2052
        %vm2070 = vcmask 1044224
        %2071 = vst.msk [vmem:[%s438] sm:$0xf] %vm2070, %v2023
        %2072 = vst.msk [vmem:[%s438 + $0x4] sm:$0xf] %vm2070, %v2025
        %2073 = vst.msk [vmem:[%s438 + $0x8] sm:$0xf] %vm2070, %v2027
        %2074 = vst.msk [vmem:[%s438 + $0xc] sm:$0xf] %vm2070, %v2029
        %2075 = vst.msk [vmem:[%s438 + $0x10] sm:$0xf] %vm2070, %v2031
        %2076 = vst.msk [vmem:[%s438 + $0x14] sm:$0xf] %vm2070, %v2033
        %2077 = vst.msk [vmem:[%s438 + $0x18] sm:$0xf] %vm2070, %v2035
        %2078 = vst.msk [vmem:[%s438 + $0x1c] sm:$0xf] %vm2070, %v2037
        %2079 = vst.msk [vmem:[%s438 + $0x20] sm:$0xf] %vm2070, %v2039
        %2080 = vst.msk [vmem:[%s438 + $0x24] sm:$0xf] %vm2070, %v2041
        %2081 = vst.msk [vmem:[%s438 + $0x28] sm:$0xf] %vm2070, %v2043
        %2082 = vst.msk [vmem:[%s438 + $0x2c] sm:$0xf] %vm2070, %v2045
        %2083 = vst.msk [vmem:[%s438 + $0x30] sm:$0xf] %vm2070, %v2047
        %2084 = vst.msk [vmem:[%s438 + $0x34] sm:$0xf] %vm2070, %v2049
        %2085 = vst.msk [vmem:[%s438 + $0x38] sm:$0xf] %vm2070, %v2051
        %2086 = vst.msk [vmem:[%s438 + $0x3c] sm:$0xf] %vm2070, %v2053
        %s2087 = sand.u32 %s206, 1
        %s2088 = scalar_lea.sflag [#allocation4], %s2087
        %s2089 = sand.u32 %s206, 1
        %s2090 = smul.addr %s2089, 64
        %s2091 = scalar_lea.vmem [#allocation14], %s2090
        // Predicated region
        $region77: #{tpu_custom_call.1} parent=47 // pred_check
          %p2092 = pneg %p216
        $region78: #{tpu_custom_call.1} parent=47 // pred_check_branch
          %2094 = sbr.rel (%p2092) target = $region80
        $region79: #{tpu_custom_call.1} parent=47 // pred_region
          %s2096 = ssub.s32 1024, 1024
          %2097 = vsyncadd %s2088, %s2096
          %s2098 = smul.addr %s31, 16
          %s2099 = smul.addr %s2098, 64
          %s2100 = scalar_lea.hbm %s7, %s2099
          %s2101 = sshll.u32 %s2091, 4
          %s2102 = int_to_ptr.vmem [resolvable:$true] %s2101
          %2107 = dma.vmem_to_hbm [thread:$0]  %s2102, 1024, %s2100, %s2088, 64, 64, 4
        $region80: #{tpu_custom_call.1} parent=47 // pred_fallthru
          _
      $region48: #{tpu_custom_call.1} parent=5 // pred_fallthru
        _
      %p2108 = scmp.le.s32.totalorder 2, %s26
      // Predicated region
      $region81: #{tpu_custom_call.1} parent=5 // pred_check
        %p2109 = pneg %p2108
      $region82: #{tpu_custom_call.1} parent=5 // pred_check_branch
        %2111 = sbr.rel (%p2109) target = $region84
      $region83: #{tpu_custom_call.1} parent=5 // pred_region
        %s2112 = ssub.s32 %s26, 2
        // Predicated region
        $region85: #{tpu_custom_call.1} parent=83 // pred_check
          %p2113 = pneg %p222
        $region86: #{tpu_custom_call.1} parent=83 // pred_check_branch
          %2115 = sbr.rel (%p2113) target = $region88
        $region87: #{tpu_custom_call.1} parent=83 // pred_region
          %s2116 = sand.u32 %s207, 1
          %s2117 = scalar_lea.sflag [#allocation4], %s2116
          %s2118 = sand.u32 %s207, 1
          %s2119 = smul.addr %s2118, 64
          %s2120 = scalar_lea.vmem [#allocation14], %s2119
          %2121 = dma.done %s2117, 1024
        $region88: #{tpu_custom_call.1} parent=83 // pred_fallthru
          _
      $region84: #{tpu_custom_call.1} parent=5 // pred_fallthru
        _
    $region6: #{tpu_custom_call.1} parent=1 // loop_footer
      %s30 = sadd.s32 1, %s26
    $region7: #{tpu_custom_call.1} parent=1 // loop_footer_branch
      %25 = sbr.rel target = $region3
    $region8: #{tpu_custom_call.1} parent=1 // loop_exit
      _
    %2122 = vsyncpa [#allocation3], 1
    %s2123 = scalar_lea.sflag [#allocation3], 1
    %2124 = vsyncpa %s2123, 1
    %2125 = vsyncpa [#allocation6], 1
    %s2126 = scalar_lea.sflag [#allocation6], 1
    %2127 = vsyncpa %s2126, 1
    %2128 = vsyncpa [#allocation9], 1
    %s2129 = scalar_lea.sflag [#allocation9], 1
    %2130 = vsyncpa %s2129, 1
    %2131 = vsyncpa [#allocation12], 1
    %2132 = vsyncpa [#allocation4], 1
    %s2133 = scalar_lea.sflag [#allocation4], 1
    %2134 = vsyncpa %s2133, 1

</llo_original>
